<compile_context>
chip_gen: v6e
topology: v6e:2x2x1
jax: 0.10.0
libtpu: 0.0.40
codegen_flags: <defaults>
</compile_context>

<pallas_src>
import jax
import jax.numpy as jnp
from jax.experimental import pallas as pl
from jax.experimental.pallas import tpu as pltpu

BN_EPS = 1e-5
GIN_EPS = 0.0          # GINConv default (train_eps=False, eps=0)
LANE = 128
SUBLANE = 8


def _round_up(x, m):
    return (x + m - 1) // m * m


def _pick_vmem_limit(required_bytes):
    """Per-chip VMEM budget (review: don't hard-code 32 MiB for every chip)."""
    try:
        cap = pltpu.get_tpu_info().vmem_capacity_bytes   # 128 MiB v5e/v6e, 64 MiB v7x
    except Exception:                                    # conservative fallback
        cap = 64 * 1024 * 1024
    return int(min(max(2 * required_bytes, 8 * 1024 * 1024), cap * 3 // 4))


# ----------------------------- Pallas kernel ------------------------------ #

def gin_stack_kernel(x_ref, a_ref, p_ref, w1_ref, w2_ref, vec_ref,
                     z_out_ref, g_out_ref):
    """Single invocation (no grid): the whole L-layer GIN stack from VMEM.

    a_ref: (Np, Np) bf16 adjacency with the (1+eps)*I self-term folded in.
    w1_ref/w2_ref: (L, Dp, Dp) f32 (hidden BN folded into W1/b1).
    vec_ref: (L, 4, Dp) f32 rows = [b1, b2, s2, t2] per layer.
    """
    num_layers = w1_ref.shape[0]
    a = a_ref[...]                                   # (Np, Np) bf16, exact ints
    p = p_ref[...]                                   # (Gp, Np) f32 0/1 pooling
    z = x_ref[...]                                   # (Np, Dp) f32

    for l in range(num_layers):                      # static unroll (L small)
        # GINConv aggregation: (1+eps)*z_i + sum_j A[i,j] z_j  ==  A' @ z.
        # bf16 operands -> single native MXU pass, f32 accumulation.  Rounding
        # z to bf16 here is the only approximation in the kernel.
        h = jnp.dot(a, z.astype(jnp.bfloat16),
                    preferred_element_type=jnp.float32)

        vec = vec_ref[l]                             # (4, Dp)
        b1 = vec[0:1, :]
        b2 = vec[1:2, :]
        s2 = vec[2:3, :]
        t2 = vec[3:4, :]

        # MLP hidden layer (eval BN folded into W1/b1) + relu.
        h1 = jnp.maximum(
            jnp.dot(h, w1_ref[l], preferred_element_type=jnp.float32) + b1, 0.0)
        # MLP output linear, outer relu, outer eval-BN affine (any-sign safe).
        h2 = jnp.maximum(
            jnp.dot(h1, w2_ref[l], preferred_element_type=jnp.float32) + b2, 0.0)
        z = h2 * s2 + t2

        z_out_ref[l] = z
        # global_add_pool for this layer: g[g, :] = sum_{n: batch[n]==g} z[n, :]
        g_out_ref[l] = jnp.dot(p, z, preferred_element_type=jnp.float32)


# ------------------------------ JAX wrapper -------------------------------- #

def gconv_forward(x_p, A_hat, P, stacked, n_nodes, n_graphs, hidden_dim):
    """Full GConv.forward on padded inputs. Returns (z_cat, g_cat)."""
    W1s, W2s, vecs = stacked
    L, Dp, _ = W1s.shape
    Np = x_p.shape[0]
    Gp = P.shape[0]

    flops = L * (2 * Np * Np * Dp          # aggregation A' @ z
                 + 4 * Np * Dp * Dp        # two MLP matmuls
                 + 2 * Gp * Np * Dp)       # pooling P @ z
    in_bytes = (4 * x_p.size + 2 * A_hat.size + 4 * P.size
                + 4 * (W1s.size + W2s.size + vecs.size))
    out_bytes = 4 * L * (Np * Dp + Gp * Dp)
    vmem_limit = _pick_vmem_limit(in_bytes + out_bytes + 4 * Np * Dp)

    vmem = pl.BlockSpec(memory_space=pltpu.MemorySpace.VMEM)
    z_stack, g_stack = pl.pallas_call(
        gin_stack_kernel,
        out_shape=(jax.ShapeDtypeStruct((L, Np, Dp), jnp.float32),
                   jax.ShapeDtypeStruct((L, Gp, Dp), jnp.float32)),
        in_specs=[vmem, vmem, vmem, vmem, vmem, vmem],
        out_specs=(vmem, vmem),
        compiler_params=pltpu.CompilerParams(vmem_limit_bytes=vmem_limit),
        cost_estimate=pl.CostEstimate(flops=flops, transcendentals=0,
                                      bytes_accessed=in_bytes + out_bytes),
    )(x_p, A_hat, P, W1s, W2s, vecs)

    # (L, N, H) -> (N, L, H) -> (N, L*H): exactly torch.cat(zs, dim=1).
    z_cat = jnp.transpose(z_stack[:, :n_nodes, :hidden_dim],
                          (1, 0, 2)).reshape(n_nodes, L * hidden_dim)
    g_cat = jnp.transpose(g_stack[:, :n_graphs, :hidden_dim],
                          (1, 0, 2)).reshape(n_graphs, L * hidden_dim)
    return z_cat, g_cat


# --------------------------- parameter handling ---------------------------- #

def init_raw_params(key, num_layers, input_dim, hidden_dim):
    """Synthetic parameters matching the PyTorch module's shapes.
    Per layer: (W1, b1, BN1[gamma,beta,mean,var], W2, b2, BNout[gamma,beta,mean,var]).
    """
    params = []
    din = input_dim
    for _ in range(num_layers):
        key, k1, k2, k3, k4, k5, k6 = jax.random.split(key, 7)
        W1 = jax.random.normal(k1, (din, hidden_dim), jnp.float32) * 0.2
        b1 = jax.random.normal(k2, (hidden_dim,), jnp.float32) * 0.1
        W2 = jax.random.normal(k3, (hidden_dim, hidden_dim), jnp.float32) * 0.2
        b2 = jax.random.normal(k4, (hidden_dim,), jnp.float32) * 0.1
        # Non-trivial eval-mode BatchNorm statistics to exercise the BN math.
        g1 = 1.0 + 0.1 * jax.random.normal(k5, (hidden_dim,), jnp.float32)
        be1 = 0.1 * jax.random.normal(k5, (hidden_dim,), jnp.float32)
        m1 = 0.1 * jax.random.normal(k6, (hidden_dim,), jnp.float32)
        v1 = 1.0 + 0.1 * jnp.abs(jax.random.normal(k6, (hidden_dim,), jnp.float32))
        g2 = jnp.ones((hidden_dim,), jnp.float32)
        be2 = jnp.zeros((hidden_dim,), jnp.float32)
        m2 = 0.05 * jax.random.normal(k2, (hidden_dim,), jnp.float32)
        v2 = 1.0 + 0.05 * jnp.abs(jax.random.normal(k3, (hidden_dim,), jnp.float32))
        params.append((W1, b1, g1, be1, m1, v1, W2, b2, g2, be2, m2, v2))
        din = hidden_dim
    return params
    # NOTE: self.project (2-layer MLP head) is defined in GConv.__init__ but never
    # used in GConv.forward, so it is not materialized here.


def fold_and_pad_params(raw_params, input_dim, hidden_dim, Dp):
    """Fold eval-BN1 into W1/b1, zero-pad to (Dp, Dp), fuse the per-layer
    (b1, b2, s2, t2) vectors into one (L, 4, Dp) tensor, stack over layers."""
    W1s, W2s, vecs = [], [], []
    din = input_dim
    for (W1, b1, g1, be1, m1, v1, W2, b2, g2, be2, m2, v2) in raw_params:
        s1 = g1 / jnp.sqrt(v1 + BN_EPS)
        t1 = be1 - m1 * s1
        W1f = W1 * s1[None, :]           # exact fold of hidden BN into the linear
        b1f = b1 * s1 + t1
        s2 = g2 / jnp.sqrt(v2 + BN_EPS)  # outer BN kept as post-relu affine (exact)
        t2 = be2 - m2 * s2
        W1s.append(jnp.zeros((Dp, Dp), jnp.float32).at[:din, :hidden_dim].set(W1f))
        W2s.append(jnp.zeros((Dp, Dp), jnp.float32).at[:hidden_dim, :hidden_dim].set(W2))
        v = jnp.zeros((4, Dp), jnp.float32)
        v = v.at[0, :hidden_dim].set(b1f)
        v = v.at[1, :hidden_dim].set(b2)
        v = v.at[2, :hidden_dim].set(s2)
        v = v.at[3, :hidden_dim].set(t2)
        vecs.append(v)
        din = hidden_dim
    return jnp.stack(W1s), jnp.stack(W2s), jnp.stack(vecs)


# --------------------------- pure-JAX reference ---------------------------- #

def gconv_reference(x, edge_index, batch, raw_params, num_graphs,
                    agg_round_bf16=False):
    """Reference of the module math.

    agg_round_bf16=False: exact f32 module semantics.
    agg_round_bf16=True : applies the same bf16 rounding to the aggregation
    operand as the kernel does (structurally identical math -> tight check).
    """
    src, dst = edge_index[0], edge_index[1]
    z = x
    zs = []
    for (W1, b1, g1, be1, m1, v1, W2, b2, g2, be2, m2, v2) in raw_params:
        zin = (z.astype(jnp.bfloat16).astype(jnp.float32)
               if agg_round_bf16 else z)
        agg = jnp.zeros_like(zin).at[dst].add(zin[src])   # GINConv sum
        h = (1.0 + GIN_EPS) * zin + agg
        s1 = g1 / jnp.sqrt(v1 + BN_EPS); t1 = be1 - m1 * s1
        h1 = jnp.maximum((h @ W1 + b1) * s1 + t1, 0.0)
        conv = h1 @ W2 + b2
        s2 = g2 / jnp.sqrt(v2 + BN_EPS); t2 = be2 - m2 * s2
        z = jnp.maximum(conv, 0.0) * s2 + t2
        zs.append(z)
    gs = [jnp.zeros((num_graphs, zl.shape[1]), zl.dtype).at[batch].add(zl)
          for zl in zs]
    return jnp.concatenate(zs, axis=1), jnp.concatenate(gs, axis=1)


# ---------------------------------- main ----------------------------------- #

if __name__ == "__main__":
    key = jax.random.PRNGKey(0)

    N = 60             # nodes (deliberately not multiple of 8 -> exercises padding)
    E = 256            # edges
    G = 5              # graphs in the batch
    INPUT_DIM = 16
    HIDDEN_DIM = 32
    NUM_LAYERS = 3

    key, kx, ke, kb, kp = jax.random.split(key, 5)
    x = jax.random.normal(kx, (N, INPUT_DIM), jnp.float32)
    edge_index = jax.random.randint(ke, (2, E), 0, N, dtype=jnp.int32)
    batch = jnp.sort(jax.random.randint(kb, (N,), 0, G, dtype=jnp.int32))

    # Padded sizes: lane-dense features (128) and sublane-aligned rows (8).
    Np = _round_up(N, SUBLANE)
    Gp = _round_up(G, SUBLANE)
    Dp = _round_up(max(INPUT_DIM, HIDDEN_DIM), LANE)

    # Plain-JAX glue: A'[dst, src] = edge multiplicity with the GIN self-term
    # (1+eps)*I folded in (exact since eps=0).  Small integer entries are
    # exactly representable in bf16, halving A's footprint and enabling a
    # native bf16 MXU aggregation.  P[g, n] = 1 iff batch[n] == g.  Zero
    # padding of rows/cols is exact (padded node garbage never leaks).
    src, dst = edge_index[0], edge_index[1]
    A_hat = jnp.zeros((Np, Np), jnp.float32).at[dst, src].add(1.0)
    A_hat = (A_hat + (1.0 + GIN_EPS) * jnp.eye(Np, dtype=jnp.float32)
             ).astype(jnp.bfloat16)
    P = jnp.zeros((Gp, Np), jnp.float32).at[batch, jnp.arange(N)].set(1.0)
    x_p = jnp.zeros((Np, Dp), jnp.float32).at[:N, :INPUT_DIM].set(x)

    raw_params = init_raw_params(kp, NUM_LAYERS, INPUT_DIM, HIDDEN_DIM)
    stacked = fold_and_pad_params(raw_params, INPUT_DIM, HIDDEN_DIM, Dp)

    z_out, g_out = gconv_forward(x_p, A_hat, P, stacked, N, G, HIDDEN_DIM)
    jax.block_until_ready((z_out, g_out))

    assert z_out.shape == (N, HIDDEN_DIM * NUM_LAYERS)
    assert g_out.shape == (G, HIDDEN_DIM * NUM_LAYERS)

    # (1) Tight structural check: reference applies the identical bf16 rounding
    #     to the aggregation operand, so the only differences are summation
    #     order / matmul precision noise.
    z_str, g_str = gconv_reference(x, edge_index, batch, raw_params, G,
                                   agg_round_bf16=True)
    assert jnp.allclose(z_out, z_str, atol=5e-4, rtol=5e-4), \
        float(jnp.max(jnp.abs(z_out - z_str)))
    assert jnp.allclose(g_out, g_str, atol=5e-3, rtol=5e-4), \
        float(jnp.max(jnp.abs(g_out - g_str)))

    # (2) Loose check vs the exact f32 module semantics: bounds the impact of
    #     the single bf16-operand rounding (the only approximation used).
    z_ref, g_ref = gconv_reference(x, edge_index, batch, raw_params, G,
                                   agg_round_bf16=False)
    assert jnp.allclose(z_out, z_ref, atol=1e-1, rtol=5e-2), \
        float(jnp.max(jnp.abs(z_out - z_ref)))
    assert jnp.allclose(g_out, g_ref, atol=5e-1, rtol=5e-2), \
        float(jnp.max(jnp.abs(g_out - g_ref)))

    print("KERNEL_OK")
</pallas_src>

<mosaic_0001>
module attributes {stable_mosaic.version = 11 : i64} {
  func.func @gin_stack_kernel(%arg0: memref<64x128xf32, #tpu.memory_space<vmem>>, %arg1: memref<64x64xbf16, #tpu.memory_space<vmem>>, %arg2: memref<8x64xf32, #tpu.memory_space<vmem>>, %arg3: memref<3x128x128xf32, #tpu.memory_space<vmem>>, %arg4: memref<3x128x128xf32, #tpu.memory_space<vmem>>, %arg5: memref<3x4x128xf32, #tpu.memory_space<vmem>>, %arg6: memref<3x64x128xf32, #tpu.memory_space<vmem>>, %arg7: memref<3x8x128xf32, #tpu.memory_space<vmem>>) attributes {dimension_semantics = [], scalar_prefetch = 0 : i64, scratch_operands = 0 : i64, tpu.core_type = #tpu.core_type<tc>} {
    %c0 = arith.constant 0 : index
    %c0_0 = arith.constant 0 : index
    %0 = vector.load %arg1[%c0, %c0_0] : memref<64x64xbf16, #tpu.memory_space<vmem>>, vector<64x64xbf16>
    %c0_1 = arith.constant 0 : index
    %c0_2 = arith.constant 0 : index
    %1 = vector.load %arg2[%c0_1, %c0_2] : memref<8x64xf32, #tpu.memory_space<vmem>>, vector<8x64xf32>
    %c0_3 = arith.constant 0 : index
    %c0_4 = arith.constant 0 : index
    %2 = vector.load %arg0[%c0_3, %c0_4] : memref<64x128xf32, #tpu.memory_space<vmem>>, vector<64x128xf32>
    %3 = arith.truncf %2 : vector<64x128xf32> to vector<64x128xbf16>
    %cst = arith.constant dense<0.000000e+00> : vector<64x128xf32>
    %4 = tpu.matmul %0, %3, %cst {dimension_numbers = #tpu.dot_dimension_numbers<[1], [0], [0], [1], [0, 0, 1, 1], [], []>} : vector<64x64xbf16>, vector<64x128xbf16>, vector<64x128xf32> -> vector<64x128xf32>
    %c0_5 = arith.constant 0 : index
    %c0_6 = arith.constant 0 : index
    %c0_7 = arith.constant 0 : index
    %5 = vector.load %arg5[%c0_5, %c0_6, %c0_7] : memref<3x4x128xf32, #tpu.memory_space<vmem>>, vector<1x4x128xf32>
    %6 = vector.shape_cast %5 : vector<1x4x128xf32> to vector<4x128xf32>
    %7 = vector.extract_strided_slice %6 {offsets = [0, 0], sizes = [1, 128], strides = [1, 1]} : vector<4x128xf32> to vector<1x128xf32>
    %8 = vector.extract_strided_slice %6 {offsets = [1, 0], sizes = [1, 128], strides = [1, 1]} : vector<4x128xf32> to vector<1x128xf32>
    %9 = vector.extract_strided_slice %6 {offsets = [2, 0], sizes = [1, 128], strides = [1, 1]} : vector<4x128xf32> to vector<1x128xf32>
    %10 = vector.extract_strided_slice %6 {offsets = [3, 0], sizes = [1, 128], strides = [1, 1]} : vector<4x128xf32> to vector<1x128xf32>
    %c0_8 = arith.constant 0 : index
    %c0_9 = arith.constant 0 : index
    %c0_10 = arith.constant 0 : index
    %11 = vector.load %arg3[%c0_8, %c0_9, %c0_10] : memref<3x128x128xf32, #tpu.memory_space<vmem>>, vector<1x128x128xf32>
    %12 = vector.shape_cast %11 : vector<1x128x128xf32> to vector<128x128xf32>
    %cst_11 = arith.constant dense<0.000000e+00> : vector<64x128xf32>
    %13 = tpu.matmul %4, %12, %cst_11 {dimension_numbers = #tpu.dot_dimension_numbers<[1], [0], [0], [1], [0, 0, 1, 1], [], []>} : vector<64x128xf32>, vector<128x128xf32>, vector<64x128xf32> -> vector<64x128xf32>
    %14 = vector.broadcast %7 : vector<1x128xf32> to vector<64x128xf32>
    %15 = arith.addf %13, %14 : vector<64x128xf32>
    %cst_12 = arith.constant 0.000000e+00 : f32
    %16 = vector.broadcast %cst_12 : f32 to vector<64x128xf32>
    %17 = arith.maximumf %15, %16 : vector<64x128xf32>
    %c0_13 = arith.constant 0 : index
    %c0_14 = arith.constant 0 : index
    %c0_15 = arith.constant 0 : index
    %18 = vector.load %arg4[%c0_13, %c0_14, %c0_15] : memref<3x128x128xf32, #tpu.memory_space<vmem>>, vector<1x128x128xf32>
    %19 = vector.shape_cast %18 : vector<1x128x128xf32> to vector<128x128xf32>
    %cst_16 = arith.constant dense<0.000000e+00> : vector<64x128xf32>
    %20 = tpu.matmul %17, %19, %cst_16 {dimension_numbers = #tpu.dot_dimension_numbers<[1], [0], [0], [1], [0, 0, 1, 1], [], []>} : vector<64x128xf32>, vector<128x128xf32>, vector<64x128xf32> -> vector<64x128xf32>
    %21 = vector.broadcast %8 : vector<1x128xf32> to vector<64x128xf32>
    %22 = arith.addf %20, %21 : vector<64x128xf32>
    %cst_17 = arith.constant 0.000000e+00 : f32
    %23 = vector.broadcast %cst_17 : f32 to vector<64x128xf32>
    %24 = arith.maximumf %22, %23 : vector<64x128xf32>
    %25 = vector.broadcast %9 : vector<1x128xf32> to vector<64x128xf32>
    %26 = arith.mulf %24, %25 : vector<64x128xf32>
    %27 = vector.broadcast %10 : vector<1x128xf32> to vector<64x128xf32>
    %28 = arith.addf %26, %27 : vector<64x128xf32>
    %c0_18 = arith.constant 0 : index
    %c0_19 = arith.constant 0 : index
    %c0_20 = arith.constant 0 : index
    %29 = vector.load %arg6[%c0_18, %c0_19, %c0_20] : memref<3x64x128xf32, #tpu.memory_space<vmem>>, vector<1x64x128xf32>
    %30 = vector.shape_cast %29 : vector<1x64x128xf32> to vector<64x128xf32>
    %31 = vector.shape_cast %28 : vector<64x128xf32> to vector<1x64x128xf32>
    tpu.vector_store %arg6[%c0_18, %c0_19, %c0_20], %31 {strides = array<i32>} : memref<3x64x128xf32, #tpu.memory_space<vmem>>, vector<1x64x128xf32>,
    %cst_21 = arith.constant dense<0.000000e+00> : vector<8x128xf32>
    %32 = tpu.matmul %1, %28, %cst_21 {dimension_numbers = #tpu.dot_dimension_numbers<[1], [0], [0], [1], [0, 0, 1, 1], [], []>} : vector<8x64xf32>, vector<64x128xf32>, vector<8x128xf32> -> vector<8x128xf32>
    %c0_22 = arith.constant 0 : index
    %c0_23 = arith.constant 0 : index
    %c0_24 = arith.constant 0 : index
    %33 = vector.load %arg7[%c0_22, %c0_23, %c0_24] : memref<3x8x128xf32, #tpu.memory_space<vmem>>, vector<1x8x128xf32>
    %34 = vector.shape_cast %33 : vector<1x8x128xf32> to vector<8x128xf32>
    %35 = vector.shape_cast %32 : vector<8x128xf32> to vector<1x8x128xf32>
    tpu.vector_store %arg7[%c0_22, %c0_23, %c0_24], %35 {strides = array<i32>} : memref<3x8x128xf32, #tpu.memory_space<vmem>>, vector<1x8x128xf32>,
    %36 = arith.truncf %28 : vector<64x128xf32> to vector<64x128xbf16>
    %cst_25 = arith.constant dense<0.000000e+00> : vector<64x128xf32>
    %37 = tpu.matmul %0, %36, %cst_25 {dimension_numbers = #tpu.dot_dimension_numbers<[1], [0], [0], [1], [0, 0, 1, 1], [], []>} : vector<64x64xbf16>, vector<64x128xbf16>, vector<64x128xf32> -> vector<64x128xf32>
    %c1 = arith.constant 1 : index
    %c0_26 = arith.constant 0 : index
    %c0_27 = arith.constant 0 : index
    %38 = vector.load %arg5[%c1, %c0_26, %c0_27] : memref<3x4x128xf32, #tpu.memory_space<vmem>>, vector<1x4x128xf32>
    %39 = vector.shape_cast %38 : vector<1x4x128xf32> to vector<4x128xf32>
    %40 = vector.extract_strided_slice %39 {offsets = [0, 0], sizes = [1, 128], strides = [1, 1]} : vector<4x128xf32> to vector<1x128xf32>
    %41 = vector.extract_strided_slice %39 {offsets = [1, 0], sizes = [1, 128], strides = [1, 1]} : vector<4x128xf32> to vector<1x128xf32>
    %42 = vector.extract_strided_slice %39 {offsets = [2, 0], sizes = [1, 128], strides = [1, 1]} : vector<4x128xf32> to vector<1x128xf32>
    %43 = vector.extract_strided_slice %39 {offsets = [3, 0], sizes = [1, 128], strides = [1, 1]} : vector<4x128xf32> to vector<1x128xf32>
    %c1_28 = arith.constant 1 : index
    %c0_29 = arith.constant 0 : index
    %c0_30 = arith.constant 0 : index
    %44 = vector.load %arg3[%c1_28, %c0_29, %c0_30] : memref<3x128x128xf32, #tpu.memory_space<vmem>>, vector<1x128x128xf32>
    %45 = vector.shape_cast %44 : vector<1x128x128xf32> to vector<128x128xf32>
    %cst_31 = arith.constant dense<0.000000e+00> : vector<64x128xf32>
    %46 = tpu.matmul %37, %45, %cst_31 {dimension_numbers = #tpu.dot_dimension_numbers<[1], [0], [0], [1], [0, 0, 1, 1], [], []>} : vector<64x128xf32>, vector<128x128xf32>, vector<64x128xf32> -> vector<64x128xf32>
    %47 = vector.broadcast %40 : vector<1x128xf32> to vector<64x128xf32>
    %48 = arith.addf %46, %47 : vector<64x128xf32>
    %cst_32 = arith.constant 0.000000e+00 : f32
    %49 = vector.broadcast %cst_32 : f32 to vector<64x128xf32>
    %50 = arith.maximumf %48, %49 : vector<64x128xf32>
    %c1_33 = arith.constant 1 : index
    %c0_34 = arith.constant 0 : index
    %c0_35 = arith.constant 0 : index
    %51 = vector.load %arg4[%c1_33, %c0_34, %c0_35] : memref<3x128x128xf32, #tpu.memory_space<vmem>>, vector<1x128x128xf32>
    %52 = vector.shape_cast %51 : vector<1x128x128xf32> to vector<128x128xf32>
    %cst_36 = arith.constant dense<0.000000e+00> : vector<64x128xf32>
    %53 = tpu.matmul %50, %52, %cst_36 {dimension_numbers = #tpu.dot_dimension_numbers<[1], [0], [0], [1], [0, 0, 1, 1], [], []>} : vector<64x128xf32>, vector<128x128xf32>, vector<64x128xf32> -> vector<64x128xf32>
    %54 = vector.broadcast %41 : vector<1x128xf32> to vector<64x128xf32>
    %55 = arith.addf %53, %54 : vector<64x128xf32>
    %cst_37 = arith.constant 0.000000e+00 : f32
    %56 = vector.broadcast %cst_37 : f32 to vector<64x128xf32>
    %57 = arith.maximumf %55, %56 : vector<64x128xf32>
    %58 = vector.broadcast %42 : vector<1x128xf32> to vector<64x128xf32>
    %59 = arith.mulf %57, %58 : vector<64x128xf32>
    %60 = vector.broadcast %43 : vector<1x128xf32> to vector<64x128xf32>
    %61 = arith.addf %59, %60 : vector<64x128xf32>
    %c1_38 = arith.constant 1 : index
    %c0_39 = arith.constant 0 : index
    %c0_40 = arith.constant 0 : index
    %62 = vector.load %arg6[%c1_38, %c0_39, %c0_40] : memref<3x64x128xf32, #tpu.memory_space<vmem>>, vector<1x64x128xf32>
    %63 = vector.shape_cast %62 : vector<1x64x128xf32> to vector<64x128xf32>
    %64 = vector.shape_cast %61 : vector<64x128xf32> to vector<1x64x128xf32>
    tpu.vector_store %arg6[%c1_38, %c0_39, %c0_40], %64 {strides = array<i32>} : memref<3x64x128xf32, #tpu.memory_space<vmem>>, vector<1x64x128xf32>,
    %cst_41 = arith.constant dense<0.000000e+00> : vector<8x128xf32>
    %65 = tpu.matmul %1, %61, %cst_41 {dimension_numbers = #tpu.dot_dimension_numbers<[1], [0], [0], [1], [0, 0, 1, 1], [], []>} : vector<8x64xf32>, vector<64x128xf32>, vector<8x128xf32> -> vector<8x128xf32>
    %c1_42 = arith.constant 1 : index
    %c0_43 = arith.constant 0 : index
    %c0_44 = arith.constant 0 : index
    %66 = vector.load %arg7[%c1_42, %c0_43, %c0_44] : memref<3x8x128xf32, #tpu.memory_space<vmem>>, vector<1x8x128xf32>
    %67 = vector.shape_cast %66 : vector<1x8x128xf32> to vector<8x128xf32>
    %68 = vector.shape_cast %65 : vector<8x128xf32> to vector<1x8x128xf32>
    tpu.vector_store %arg7[%c1_42, %c0_43, %c0_44], %68 {strides = array<i32>} : memref<3x8x128xf32, #tpu.memory_space<vmem>>, vector<1x8x128xf32>,
    %69 = arith.truncf %61 : vector<64x128xf32> to vector<64x128xbf16>
    %cst_45 = arith.constant dense<0.000000e+00> : vector<64x128xf32>
    %70 = tpu.matmul %0, %69, %cst_45 {dimension_numbers = #tpu.dot_dimension_numbers<[1], [0], [0], [1], [0, 0, 1, 1], [], []>} : vector<64x64xbf16>, vector<64x128xbf16>, vector<64x128xf32> -> vector<64x128xf32>
    %c2 = arith.constant 2 : index
    %c0_46 = arith.constant 0 : index
    %c0_47 = arith.constant 0 : index
    %71 = vector.load %arg5[%c2, %c0_46, %c0_47] : memref<3x4x128xf32, #tpu.memory_space<vmem>>, vector<1x4x128xf32>
    %72 = vector.shape_cast %71 : vector<1x4x128xf32> to vector<4x128xf32>
    %73 = vector.extract_strided_slice %72 {offsets = [0, 0], sizes = [1, 128], strides = [1, 1]} : vector<4x128xf32> to vector<1x128xf32>
    %74 = vector.extract_strided_slice %72 {offsets = [1, 0], sizes = [1, 128], strides = [1, 1]} : vector<4x128xf32> to vector<1x128xf32>
    %75 = vector.extract_strided_slice %72 {offsets = [2, 0], sizes = [1, 128], strides = [1, 1]} : vector<4x128xf32> to vector<1x128xf32>
    %76 = vector.extract_strided_slice %72 {offsets = [3, 0], sizes = [1, 128], strides = [1, 1]} : vector<4x128xf32> to vector<1x128xf32>
    %c2_48 = arith.constant 2 : index
    %c0_49 = arith.constant 0 : index
    %c0_50 = arith.constant 0 : index
    %77 = vector.load %arg3[%c2_48, %c0_49, %c0_50] : memref<3x128x128xf32, #tpu.memory_space<vmem>>, vector<1x128x128xf32>
    %78 = vector.shape_cast %77 : vector<1x128x128xf32> to vector<128x128xf32>
    %cst_51 = arith.constant dense<0.000000e+00> : vector<64x128xf32>
    %79 = tpu.matmul %70, %78, %cst_51 {dimension_numbers = #tpu.dot_dimension_numbers<[1], [0], [0], [1], [0, 0, 1, 1], [], []>} : vector<64x128xf32>, vector<128x128xf32>, vector<64x128xf32> -> vector<64x128xf32>
    %80 = vector.broadcast %73 : vector<1x128xf32> to vector<64x128xf32>
    %81 = arith.addf %79, %80 : vector<64x128xf32>
    %cst_52 = arith.constant 0.000000e+00 : f32
    %82 = vector.broadcast %cst_52 : f32 to vector<64x128xf32>
    %83 = arith.maximumf %81, %82 : vector<64x128xf32>
    %c2_53 = arith.constant 2 : index
    %c0_54 = arith.constant 0 : index
    %c0_55 = arith.constant 0 : index
    %84 = vector.load %arg4[%c2_53, %c0_54, %c0_55] : memref<3x128x128xf32, #tpu.memory_space<vmem>>, vector<1x128x128xf32>
    %85 = vector.shape_cast %84 : vector<1x128x128xf32> to vector<128x128xf32>
    %cst_56 = arith.constant dense<0.000000e+00> : vector<64x128xf32>
    %86 = tpu.matmul %83, %85, %cst_56 {dimension_numbers = #tpu.dot_dimension_numbers<[1], [0], [0], [1], [0, 0, 1, 1], [], []>} : vector<64x128xf32>, vector<128x128xf32>, vector<64x128xf32> -> vector<64x128xf32>
    %87 = vector.broadcast %74 : vector<1x128xf32> to vector<64x128xf32>
    %88 = arith.addf %86, %87 : vector<64x128xf32>
    %cst_57 = arith.constant 0.000000e+00 : f32
    %89 = vector.broadcast %cst_57 : f32 to vector<64x128xf32>
    %90 = arith.maximumf %88, %89 : vector<64x128xf32>
    %91 = vector.broadcast %75 : vector<1x128xf32> to vector<64x128xf32>
    %92 = arith.mulf %90, %91 : vector<64x128xf32>
    %93 = vector.broadcast %76 : vector<1x128xf32> to vector<64x128xf32>
    %94 = arith.addf %92, %93 : vector<64x128xf32>
    %c2_58 = arith.constant 2 : index
    %c0_59 = arith.constant 0 : index
    %c0_60 = arith.constant 0 : index
    %95 = vector.load %arg6[%c2_58, %c0_59, %c0_60] : memref<3x64x128xf32, #tpu.memory_space<vmem>>, vector<1x64x128xf32>
    %96 = vector.shape_cast %95 : vector<1x64x128xf32> to vector<64x128xf32>
    %97 = vector.shape_cast %94 : vector<64x128xf32> to vector<1x64x128xf32>
    tpu.vector_store %arg6[%c2_58, %c0_59, %c0_60], %97 {strides = array<i32>} : memref<3x64x128xf32, #tpu.memory_space<vmem>>, vector<1x64x128xf32>,
    %cst_61 = arith.constant dense<0.000000e+00> : vector<8x128xf32>
    %98 = tpu.matmul %1, %94, %cst_61 {dimension_numbers = #tpu.dot_dimension_numbers<[1], [0], [0], [1], [0, 0, 1, 1], [], []>} : vector<8x64xf32>, vector<64x128xf32>, vector<8x128xf32> -> vector<8x128xf32>
    %c2_62 = arith.constant 2 : index
    %c0_63 = arith.constant 0 : index
    %c0_64 = arith.constant 0 : index
    %99 = vector.load %arg7[%c2_62, %c0_63, %c0_64] : memref<3x8x128xf32, #tpu.memory_space<vmem>>, vector<1x8x128xf32>
    %100 = vector.shape_cast %99 : vector<1x8x128xf32> to vector<8x128xf32>
    %101 = vector.shape_cast %98 : vector<8x128xf32> to vector<1x8x128xf32>
    tpu.vector_store %arg7[%c2_62, %c0_63, %c0_64], %101 {strides = array<i32>} : memref<3x8x128xf32, #tpu.memory_space<vmem>>, vector<1x8x128xf32>,
    return
  }
}

</mosaic_0001>

<llo_original>
// kernel: tpu_custom_call.1
$region0: #{tpu_custom_call.1}
  #allocation0 [shape = 'u32[]', space=smem, size = 0x4, offset = 0x4, fixed_abs, tag = 'smem constant byte address 0x4 - core index']
  #allocation1 [shape = 'u32[144,128]{1,0:T(1,128)}', space=vmem, size = 0x12000, scoped, tag = 'internal scratch']
  %s0 = inlined_call_operand.hbm [shape: f32[64,128], index: 0, kind: input, shape index: {}]
  %s1 = inlined_call_operand.hbm [shape: bf16[64,64], index: 1, kind: input, shape index: {}]
  %s2 = inlined_call_operand.hbm [shape: f32[8,64], index: 2, kind: input, shape index: {}]
  %s3 = inlined_call_operand.hbm [shape: f32[3,128,128], index: 3, kind: input, shape index: {}]
  %s4 = inlined_call_operand.hbm [shape: f32[3,128,128], index: 4, kind: input, shape index: {}]
  %s5 = inlined_call_operand.hbm [shape: f32[3,4,128], index: 5, kind: input, shape index: {}]
  %s6 = inlined_call_operand.hbm [shape: f32[3,64,128], index: 6, kind: output, shape index: {0}]
  %s7 = inlined_call_operand.hbm [shape: f32[3,8,128], index: 7, kind: output, shape index: {1}]
  %8 = xla_tuple %s6, %s7
  %s9 = sld [smem:[#allocation0]]
  $region66: #{tpu_custom_call.1} parent=0
    _
  %s11 = ssub.s32 1, %s9
  %s12 = scalar_select 0, %s11, %s9
  $region1: #{tpu_custom_call.1} parent=0
    #allocation2 [shape = 'u8[32768]{0}', space=vmem, size = 0x8000, scoped, tag = 'input window, operand 0, single buffered']
    #allocation3 [shape = 's32[1]{0}', space=sflag, size = 0x4, scoped, tag = 'scoped memory for tpu_custom_call.1']
    #allocation4 [shape = 's32[1]{0}', space=sflag, size = 0x4, scoped, tag = 'scoped memory for tpu_custom_call.1']
    #allocation5 [shape = 'u8[16384]{0}', space=vmem, size = 0x4000, scoped, tag = 'input window, operand 1, single buffered']
    #allocation6 [shape = 's32[1]{0}', space=sflag, size = 0x4, scoped, tag = 'scoped memory for tpu_custom_call.1']
    #allocation7 [shape = 'u8[4096]{0}', space=vmem, size = 0x1000, scoped, tag = 'input window, operand 2, single buffered']
    #allocation8 [shape = 'u8[196608]{0}', space=vmem, size = 0x30000, scoped, tag = 'input window, operand 3, single buffered']
    #allocation9 [shape = 's32[1]{0}', space=sflag, size = 0x4, scoped, tag = 'scoped memory for tpu_custom_call.1']
    #allocation10 [shape = 'u8[196608]{0}', space=vmem, size = 0x30000, scoped, tag = 'input window, operand 4, single buffered']
    #allocation11 [shape = 'u8[6144]{0}', space=vmem, size = 0x1800, scoped, tag = 'input window, operand 5, single buffered']
    #allocation12 [shape = 's32[1]{0}', space=sflag, size = 0x4, scoped, tag = 'scoped memory for tpu_custom_call.1']
    #allocation13 [shape = 'u8[98304]{0}', space=vmem, size = 0x18000, scoped, tag = 'output window, operand 0, single buffered']
    #allocation14 [shape = 'u8[12288]{0}', space=vmem, size = 0x3000, scoped, tag = 'output window, operand 1, single buffered']
    #allocation15 [shape = 's32[1]{0}', space=sflag, size = 0x4, scoped, tag = 'scoped memory for tpu_custom_call.1']
    %13 = vsyncpa [#allocation3], 0
    %14 = vsyncpa [#allocation6], 0
    %15 = vsyncpa [#allocation9], 0
    %16 = vsyncpa [#allocation12], 0
    %17 = vsyncpa [#allocation4], 0
    %18 = vsyncpa [#allocation15], 0
    // Predicated region
    $region2: #{tpu_custom_call.1} parent=1 // pred_check
      _
    $region3: #{tpu_custom_call.1} parent=1 // pred_check_branch
      %20 = sbr.rel (0) target = $region5
    $region4: #{tpu_custom_call.1} parent=1 // pred_region
      %s22 = ssub.s32 1024, 1024
      %23 = vsyncadd [#allocation3], %s22
      %s24 = sshll.u32 [#allocation2], 4
      %s25 = int_to_ptr.vmem [resolvable:$true] %s24
      %30 = dma.hbm_to_vmem [thread:$0]  %s0, 1024, %s25, [#allocation3], 128, 128, 8
    $region5: #{tpu_custom_call.1} parent=1 // pred_fallthru
      _
    // Predicated region
    $region6: #{tpu_custom_call.1} parent=1 // pred_check
      _
    $region7: #{tpu_custom_call.1} parent=1 // pred_check_branch
      %32 = sbr.rel (0) target = $region9
    $region8: #{tpu_custom_call.1} parent=1 // pred_region
      %s34 = ssub.s32 512, 512
      %35 = vsyncadd [#allocation6], %s34
      %s36 = sshll.u32 [#allocation5], 4
      %s37 = int_to_ptr.vmem [resolvable:$true] %s36
      %42 = dma.hbm_to_vmem [thread:$0]  %s1, 512, %s37, [#allocation6], 64, 64, 4
    $region9: #{tpu_custom_call.1} parent=1 // pred_fallthru
      _
    // Predicated region
    $region10: #{tpu_custom_call.1} parent=1 // pred_check
      _
    $region11: #{tpu_custom_call.1} parent=1 // pred_check_branch
      %44 = sbr.rel (0) target = $region13
    $region12: #{tpu_custom_call.1} parent=1 // pred_region
      %s46 = ssub.s32 128, 128
      %47 = vsyncadd [#allocation6], %s46
      %s49 = sshll.u32 [#allocation7], 4
      %s50 = int_to_ptr.vmem [resolvable:$true] %s49
      %52 = dma.hbm_to_vmem [thread:$0]  %s2, 128, %s50, [#allocation6]
    $region13: #{tpu_custom_call.1} parent=1 // pred_fallthru
      _
    // Predicated region
    $region14: #{tpu_custom_call.1} parent=1 // pred_check
      _
    $region15: #{tpu_custom_call.1} parent=1 // pred_check_branch
      %54 = sbr.rel (0) target = $region17
    $region16: #{tpu_custom_call.1} parent=1 // pred_region
      %s56 = ssub.s32 6144, 6144
      %57 = vsyncadd [#allocation9], %s56
      %s58 = sshll.u32 [#allocation8], 4
      %s59 = int_to_ptr.vmem [resolvable:$true] %s58
      %64 = dma.hbm_to_vmem [thread:$0]  %s3, 6144, %s59, [#allocation9], 128, 128, 8
    $region17: #{tpu_custom_call.1} parent=1 // pred_fallthru
      _
    // Predicated region
    $region18: #{tpu_custom_call.1} parent=1 // pred_check
      _
    $region19: #{tpu_custom_call.1} parent=1 // pred_check_branch
      %66 = sbr.rel (0) target = $region21
    $region20: #{tpu_custom_call.1} parent=1 // pred_region
      %s68 = ssub.s32 6144, 6144
      %69 = vsyncadd [#allocation9], %s68
      %s70 = sshll.u32 [#allocation10], 4
      %s71 = int_to_ptr.vmem [resolvable:$true] %s70
      %76 = dma.hbm_to_vmem [thread:$0]  %s4, 6144, %s71, [#allocation9], 128, 128, 8
    $region21: #{tpu_custom_call.1} parent=1 // pred_fallthru
      _
    // Predicated region
    $region22: #{tpu_custom_call.1} parent=1 // pred_check
      _
    $region23: #{tpu_custom_call.1} parent=1 // pred_check_branch
      %78 = sbr.rel (0) target = $region25
    $region24: #{tpu_custom_call.1} parent=1 // pred_region
      %s80 = ssub.s32 192, 192
      %81 = vsyncadd [#allocation12], %s80
      %s82 = sshll.u32 [#allocation11], 4
      %s83 = int_to_ptr.vmem [resolvable:$true] %s82
      %88 = dma.hbm_to_vmem [thread:$0]  %s5, 192, %s83, [#allocation12], 64, 64, 4
    $region25: #{tpu_custom_call.1} parent=1 // pred_fallthru
      _
    // Predicated region
    $region26: #{tpu_custom_call.1} parent=1 // pred_check
      _
    $region27: #{tpu_custom_call.1} parent=1 // pred_check_branch
      %90 = sbr.rel (0) target = $region29
    $region28: #{tpu_custom_call.1} parent=1 // pred_region
      %91 = dma.done [#allocation3], 1024
    $region29: #{tpu_custom_call.1} parent=1 // pred_fallthru
      _
    // Predicated region
    $region30: #{tpu_custom_call.1} parent=1 // pred_check
      _
    $region31: #{tpu_custom_call.1} parent=1 // pred_check_branch
      %93 = sbr.rel (0) target = $region33
    $region32: #{tpu_custom_call.1} parent=1 // pred_region
      %94 = dma.done [#allocation6], 512
    $region33: #{tpu_custom_call.1} parent=1 // pred_fallthru
      _
    // Predicated region
    $region34: #{tpu_custom_call.1} parent=1 // pred_check
      _
    $region35: #{tpu_custom_call.1} parent=1 // pred_check_branch
      %96 = sbr.rel (0) target = $region37
    $region36: #{tpu_custom_call.1} parent=1 // pred_region
      %97 = dma.done [#allocation6], 128
    $region37: #{tpu_custom_call.1} parent=1 // pred_fallthru
      _
    // Predicated region
    $region38: #{tpu_custom_call.1} parent=1 // pred_check
      _
    $region39: #{tpu_custom_call.1} parent=1 // pred_check_branch
      %99 = sbr.rel (0) target = $region41
    $region40: #{tpu_custom_call.1} parent=1 // pred_region
      %100 = dma.done [#allocation9], 6144
    $region41: #{tpu_custom_call.1} parent=1 // pred_fallthru
      _
    // Predicated region
    $region42: #{tpu_custom_call.1} parent=1 // pred_check
      _
    $region43: #{tpu_custom_call.1} parent=1 // pred_check_branch
      %102 = sbr.rel (0) target = $region45
    $region44: #{tpu_custom_call.1} parent=1 // pred_region
      %103 = dma.done [#allocation9], 6144
    $region45: #{tpu_custom_call.1} parent=1 // pred_fallthru
      _
    // Predicated region
    $region46: #{tpu_custom_call.1} parent=1 // pred_check
      _
    $region47: #{tpu_custom_call.1} parent=1 // pred_check_branch
      %105 = sbr.rel (0) target = $region49
    $region48: #{tpu_custom_call.1} parent=1 // pred_region
      %106 = dma.done [#allocation12], 192
    $region49: #{tpu_custom_call.1} parent=1 // pred_fallthru
      _
    %v108 = vld [vmem:[#allocation5] sm:$0xf]
    %v109 = vld [vmem:[#allocation5 + $0x4] sm:$0xf]
    %v110 = vld [vmem:[#allocation5 + $0x8] sm:$0xf]
    %v111 = vld [vmem:[#allocation5 + $0xc] sm:$0xf]
    %v112 = vld [vmem:[#allocation5 + $0x10] sm:$0xf]
    %v113 = vld [vmem:[#allocation5 + $0x14] sm:$0xf]
    %v114 = vld [vmem:[#allocation5 + $0x18] sm:$0xf]
    %v115 = vld [vmem:[#allocation5 + $0x1c] sm:$0xf]
    %v116 = vld [vmem:[#allocation7] sm:$0xff]
    %v117 = vld [vmem:[#allocation2] sm:$0xff]
    %v118 = vld [vmem:[#allocation2 + $0x8] sm:$0xff]
    %v119 = vld [vmem:[#allocation2 + $0x10] sm:$0xff]
    %v120 = vld [vmem:[#allocation2 + $0x18] sm:$0xff]
    %v121 = vld [vmem:[#allocation2 + $0x20] sm:$0xff]
    %v122 = vld [vmem:[#allocation2 + $0x28] sm:$0xff]
    %v123 = vld [vmem:[#allocation2 + $0x30] sm:$0xff]
    %v124 = vld [vmem:[#allocation2 + $0x38] sm:$0xff]
    %v125 = vpack.c.bf16 %v118, %v117
    %v126 = vpack.c.bf16 %v120, %v119
    %v127 = vpack.c.bf16 %v122, %v121
    %v128 = vpack.c.bf16 %v124, %v123
    %v137 = vunpack.c.l.b16 %v108
    %v138 = vunpack.c.l.b16 %v109
    %v139 = vunpack.c.l.b16 %v110
    %v140 = vunpack.c.l.b16 %v111
    %v141 = vunpack.c.l.b16 %v112
    %v142 = vunpack.c.l.b16 %v113
    %v143 = vunpack.c.l.b16 %v114
    %v144 = vunpack.c.l.b16 %v115
    %v145 = vpack.c.b16 %v138, %v137
    %v146 = vpack.c.b16 %v140, %v139
    %v147 = vpack.c.b16 %v142, %v141
    %v148 = vpack.c.b16 %v144, %v143
    %vm149 = vcmask 523264
    %v151 = vsel %vm149, %v145, 0
    %v154 = vsel %vm149, %v146, 0
    %v157 = vsel %vm149, %v147, 0
    %v160 = vsel %vm149, %v148, 0
    %162 = vmatprep.subr.bf16.mxu0 0
    %163 = vmatpush1.bf16.msra.mxu0 0
    %164 = vmatprep.subr.bf16.mxu0 0
    %165 = vmatpush1.bf16.msra.mxu0 0
    %166 = vmatprep.subr.bf16.mxu0 0
    %167 = vmatpush1.bf16.msra.mxu0 0
    %168 = vmatprep.subr.bf16.mxu0 0
    %169 = vmatpush1.bf16.msra.mxu0 0
    %170 = vmatprep.subr.bf16.mxu0 0
    %171 = vmatpush1.bf16.msra.mxu0 %v128
    %172 = vmatprep.subr.bf16.mxu0 0
    %173 = vmatpush1.bf16.msra.mxu0 %v127
    %174 = vmatprep.subr.bf16.mxu0 0
    %175 = vmatpush1.bf16.msra.mxu0 %v126
    %176 = vmatprep.subr.bf16.mxu0 0
    %177 = vmatpush1.bf16.msra.mxu0 %v125
    %178 = vmatprep.subr.bf16.mxu0 0
    %179 = vmatpush2.bf16.msra.mxu0 0
    %180 = vmatprep.subr.bf16.mxu0 0
    %181 = vmatpush2.bf16.msra.mxu0 0
    %182 = vmatprep.subr.bf16.mxu0 0
    %183 = vmatpush2.bf16.msra.mxu0 0
    %184 = vmatprep.subr.bf16.mxu0 0
    %185 = vmatpush2.bf16.msra.mxu0 0
    %186 = vmatprep.subr.bf16.mxu0 0
    %187 = vmatpush2.bf16.msra.mxu0 0
    %188 = vmatprep.subr.bf16.mxu0 0
    %189 = vmatpush2.bf16.msra.mxu0 0
    %190 = vmatprep.subr.bf16.mxu0 0
    %191 = vmatpush2.bf16.msra.mxu0 0
    %192 = vmatprep.subr.bf16.mxu0 0
    %193 = vmatpush2.bf16.msra.mxu0 0
    %194 = vmatprep.mubr.bf16.mxu0 0
    %195 = vmatmul.mubr.bf16.gmra.mxu0 %v151
    %v196 = vpop.f32.mrf.mxu0
    %v197 = vadd.f32 0.0, %v196
    %v198 = vpop.f32.mrf.mxu0
    %v199 = vpop.f32.mrf.mxu0
    %v200 = vadd.f32 0.0, %v199
    %v201 = vpop.f32.mrf.mxu0
    %202 = vmatprep.mubr.bf16.mxu0 0
    %203 = vmatmul.mubr.bf16.gmra.mxu0 %v154
    %v204 = vpop.f32.mrf.mxu0
    %v205 = vadd.f32 0.0, %v204
    %v206 = vpop.f32.mrf.mxu0
    %v207 = vpop.f32.mrf.mxu0
    %v208 = vadd.f32 0.0, %v207
    %v209 = vpop.f32.mrf.mxu0
    %210 = vmatprep.mubr.bf16.mxu0 0
    %211 = vmatmul.mubr.bf16.gmra.mxu0 %v157
    %v212 = vpop.f32.mrf.mxu0
    %v213 = vadd.f32 0.0, %v212
    %v214 = vpop.f32.mrf.mxu0
    %v215 = vpop.f32.mrf.mxu0
    %v216 = vadd.f32 0.0, %v215
    %v217 = vpop.f32.mrf.mxu0
    %218 = vmatprep.mubr.bf16.mxu0 0
    %219 = vmatmul.mubr.bf16.gmra.mxu0 %v160
    %v220 = vpop.f32.mrf.mxu0
    %v221 = vadd.f32 0.0, %v220
    %v222 = vpop.f32.mrf.mxu0
    %v223 = vpop.f32.mrf.mxu0
    %v224 = vadd.f32 0.0, %v223
    %v225 = vpop.f32.mrf.mxu0
    %226 = vdwg.mxu0
    %v227 = vld [vmem:[#allocation11] sm:$0xf]
    %v228 = vld [vmem:[#allocation8] sm:$0xff]
    %v229 = vld [vmem:[#allocation8 + $0x8] sm:$0xff]
    %v230 = vld [vmem:[#allocation8 + $0x10] sm:$0xff]
    %v231 = vld [vmem:[#allocation8 + $0x18] sm:$0xff]
    %v232 = vld [vmem:[#allocation8 + $0x20] sm:$0xff]
    %v233 = vld [vmem:[#allocation8 + $0x28] sm:$0xff]
    %v234 = vld [vmem:[#allocation8 + $0x30] sm:$0xff]
    %v235 = vld [vmem:[#allocation8 + $0x38] sm:$0xff]
    %v236 = vld [vmem:[#allocation8 + $0x40] sm:$0xff]
    %v237 = vld [vmem:[#allocation8 + $0x48] sm:$0xff]
    %v238 = vld [vmem:[#allocation8 + $0x50] sm:$0xff]
    %v239 = vld [vmem:[#allocation8 + $0x58] sm:$0xff]
    %v240 = vld [vmem:[#allocation8 + $0x60] sm:$0xff]
    %v241 = vld [vmem:[#allocation8 + $0x68] sm:$0xff]
    %v242 = vld [vmem:[#allocation8 + $0x70] sm:$0xff]
    %v243 = vld [vmem:[#allocation8 + $0x78] sm:$0xff]
    %v244 = vlaneseq
    %v245 = vshrl.u32 %v244, 7
    %v246 = vsub.s32 0, %v245
    %v247 = vrot.slane %v227, %v246
    %248 = vmatprep.subr.mxu0 0.0
    %249 = vmatpush1.msra.mxu0 %v243
    %250 = vmatprep.subr.mxu0 0.0
    %251 = vmatpush1.msra.mxu0 %v242
    %252 = vmatprep.subr.mxu0 0.0
    %253 = vmatpush1.msra.mxu0 %v241
    %254 = vmatprep.subr.mxu0 0.0
    %255 = vmatpush1.msra.mxu0 %v240
    %256 = vmatprep.subr.mxu0 0.0
    %257 = vmatpush1.msra.mxu0 %v239
    %258 = vmatprep.subr.mxu0 0.0
    %259 = vmatpush1.msra.mxu0 %v238
    %260 = vmatprep.subr.mxu0 0.0
    %261 = vmatpush1.msra.mxu0 %v237
    %262 = vmatprep.subr.mxu0 0.0
    %263 = vmatpush1.msra.mxu0 %v236
    %264 = vmatprep.subr.mxu0 0.0
    %265 = vmatpush1.msra.mxu0 %v235
    %266 = vmatprep.subr.mxu0 0.0
    %267 = vmatpush1.msra.mxu0 %v234
    %268 = vmatprep.subr.mxu0 0.0
    %269 = vmatpush1.msra.mxu0 %v233
    %270 = vmatprep.subr.mxu0 0.0
    %271 = vmatpush1.msra.mxu0 %v232
    %272 = vmatprep.subr.mxu0 0.0
    %273 = vmatpush1.msra.mxu0 %v231
    %274 = vmatprep.subr.mxu0 0.0
    %275 = vmatpush1.msra.mxu0 %v230
    %276 = vmatprep.subr.mxu0 0.0
    %277 = vmatpush1.msra.mxu0 %v229
    %278 = vmatprep.subr.mxu0 0.0
    %279 = vmatpush1.msra.mxu0 %v228
    %280 = vmatprep.subr.mxu0 0.0
    %281 = vmatpush2.msra.mxu0 0.0
    %282 = vmatprep.subr.mxu0 0.0
    %283 = vmatpush2.msra.mxu0 0.0
    %284 = vmatprep.subr.mxu0 0.0
    %285 = vmatpush2.msra.mxu0 0.0
    %286 = vmatprep.subr.mxu0 0.0
    %287 = vmatpush2.msra.mxu0 0.0
    %288 = vmatprep.subr.mxu0 0.0
    %289 = vmatpush2.msra.mxu0 0.0
    %290 = vmatprep.subr.mxu0 0.0
    %291 = vmatpush2.msra.mxu0 0.0
    %292 = vmatprep.subr.mxu0 0.0
    %293 = vmatpush2.msra.mxu0 0.0
    %294 = vmatprep.subr.mxu0 0.0
    %295 = vmatpush2.msra.mxu0 0.0
    %296 = vmatprep.subr.mxu0 0.0
    %297 = vmatpush2.msra.mxu0 0.0
    %298 = vmatprep.subr.mxu0 0.0
    %299 = vmatpush2.msra.mxu0 0.0
    %300 = vmatprep.subr.mxu0 0.0
    %301 = vmatpush2.msra.mxu0 0.0
    %302 = vmatprep.subr.mxu0 0.0
    %303 = vmatpush2.msra.mxu0 0.0
    %304 = vmatprep.subr.mxu0 0.0
    %305 = vmatpush2.msra.mxu0 0.0
    %306 = vmatprep.subr.mxu0 0.0
    %307 = vmatpush2.msra.mxu0 0.0
    %308 = vmatprep.subr.mxu0 0.0
    %309 = vmatpush2.msra.mxu0 0.0
    %310 = vmatprep.subr.mxu0 0.0
    %311 = vmatpush2.msra.mxu0 0.0
    %312 = vmatprep.mubr.f32.mxu0 0.0
    %313 = vmatmul.mubr.f32.gmra.mxu0 %v197
    %v314 = vpop.f32.mrf.mxu0
    %v315 = vadd.f32 %v247, %v314
    %v316 = vpop.f32.mrf.mxu0
    %317 = vmatprep.mubr.f32.mxu0 0.0
    %318 = vmatmul.mubr.f32.gmra.mxu0 %v200
    %v319 = vpop.f32.mrf.mxu0
    %v320 = vadd.f32 %v247, %v319
    %v321 = vpop.f32.mrf.mxu0
    %322 = vmatprep.mubr.f32.mxu0 0.0
    %323 = vmatmul.mubr.f32.gmra.mxu0 %v205
    %v324 = vpop.f32.mrf.mxu0
    %v325 = vadd.f32 %v247, %v324
    %v326 = vpop.f32.mrf.mxu0
    %327 = vmatprep.mubr.f32.mxu0 0.0
    %328 = vmatmul.mubr.f32.gmra.mxu0 %v208
    %v329 = vpop.f32.mrf.mxu0
    %v330 = vadd.f32 %v247, %v329
    %v331 = vpop.f32.mrf.mxu0
    %332 = vmatprep.mubr.f32.mxu0 0.0
    %333 = vmatmul.mubr.f32.gmra.mxu0 %v213
    %v334 = vpop.f32.mrf.mxu0
    %v335 = vadd.f32 %v247, %v334
    %v336 = vpop.f32.mrf.mxu0
    %337 = vmatprep.mubr.f32.mxu0 0.0
    %338 = vmatmul.mubr.f32.gmra.mxu0 %v216
    %v339 = vpop.f32.mrf.mxu0
    %v340 = vadd.f32 %v247, %v339
    %v341 = vpop.f32.mrf.mxu0
    %342 = vmatprep.mubr.f32.mxu0 0.0
    %343 = vmatmul.mubr.f32.gmra.mxu0 %v221
    %v344 = vpop.f32.mrf.mxu0
    %v345 = vadd.f32 %v247, %v344
    %v346 = vpop.f32.mrf.mxu0
    %347 = vmatprep.mubr.f32.mxu0 0.0
    %348 = vmatmul.mubr.f32.gmra.mxu0 %v224
    %v349 = vpop.f32.mrf.mxu0
    %v350 = vadd.f32 %v247, %v349
    %v351 = vpop.f32.mrf.mxu0
    %352 = vdwg.mxu0
    %v353 = vmax.f32 %v315, 0.0
    %v354 = vmax.f32 %v320, 0.0
    %v355 = vmax.f32 %v325, 0.0
    %v356 = vmax.f32 %v330, 0.0
    %v357 = vmax.f32 %v335, 0.0
    %v358 = vmax.f32 %v340, 0.0
    %v359 = vmax.f32 %v345, 0.0
    %v360 = vmax.f32 %v350, 0.0
    %v361 = vld [vmem:[#allocation10] sm:$0xff]
    %v362 = vld [vmem:[#allocation10 + $0x8] sm:$0xff]
    %v363 = vld [vmem:[#allocation10 + $0x10] sm:$0xff]
    %v364 = vld [vmem:[#allocation10 + $0x18] sm:$0xff]
    %v365 = vld [vmem:[#allocation10 + $0x20] sm:$0xff]
    %v366 = vld [vmem:[#allocation10 + $0x28] sm:$0xff]
    %v367 = vld [vmem:[#allocation10 + $0x30] sm:$0xff]
    %v368 = vld [vmem:[#allocation10 + $0x38] sm:$0xff]
    %v369 = vld [vmem:[#allocation10 + $0x40] sm:$0xff]
    %v370 = vld [vmem:[#allocation10 + $0x48] sm:$0xff]
    %v371 = vld [vmem:[#allocation10 + $0x50] sm:$0xff]
    %v372 = vld [vmem:[#allocation10 + $0x58] sm:$0xff]
    %v373 = vld [vmem:[#allocation10 + $0x60] sm:$0xff]
    %v374 = vld [vmem:[#allocation10 + $0x68] sm:$0xff]
    %v375 = vld [vmem:[#allocation10 + $0x70] sm:$0xff]
    %v376 = vld [vmem:[#allocation10 + $0x78] sm:$0xff]
    %v377 = vlaneseq
    %v378 = vshrl.u32 %v377, 7
    %v379 = vsub.s32 1, %v378
    %v380 = vrot.slane %v227, %v379
    %381 = vmatprep.subr.mxu0 0.0
    %382 = vmatpush1.msra.mxu0 %v376
    %383 = vmatprep.subr.mxu0 0.0
    %384 = vmatpush1.msra.mxu0 %v375
    %385 = vmatprep.subr.mxu0 0.0
    %386 = vmatpush1.msra.mxu0 %v374
    %387 = vmatprep.subr.mxu0 0.0
    %388 = vmatpush1.msra.mxu0 %v373
    %389 = vmatprep.subr.mxu0 0.0
    %390 = vmatpush1.msra.mxu0 %v372
    %391 = vmatprep.subr.mxu0 0.0
    %392 = vmatpush1.msra.mxu0 %v371
    %393 = vmatprep.subr.mxu0 0.0
    %394 = vmatpush1.msra.mxu0 %v370
    %395 = vmatprep.subr.mxu0 0.0
    %396 = vmatpush1.msra.mxu0 %v369
    %397 = vmatprep.subr.mxu0 0.0
    %398 = vmatpush1.msra.mxu0 %v368
    %399 = vmatprep.subr.mxu0 0.0
    %400 = vmatpush1.msra.mxu0 %v367
    %401 = vmatprep.subr.mxu0 0.0
    %402 = vmatpush1.msra.mxu0 %v366
    %403 = vmatprep.subr.mxu0 0.0
    %404 = vmatpush1.msra.mxu0 %v365
    %405 = vmatprep.subr.mxu0 0.0
    %406 = vmatpush1.msra.mxu0 %v364
    %407 = vmatprep.subr.mxu0 0.0
    %408 = vmatpush1.msra.mxu0 %v363
    %409 = vmatprep.subr.mxu0 0.0
    %410 = vmatpush1.msra.mxu0 %v362
    %411 = vmatprep.subr.mxu0 0.0
    %412 = vmatpush1.msra.mxu0 %v361
    %413 = vmatprep.subr.mxu0 0.0
    %414 = vmatpush2.msra.mxu0 0.0
    %415 = vmatprep.subr.mxu0 0.0
    %416 = vmatpush2.msra.mxu0 0.0
    %417 = vmatprep.subr.mxu0 0.0
    %418 = vmatpush2.msra.mxu0 0.0
    %419 = vmatprep.subr.mxu0 0.0
    %420 = vmatpush2.msra.mxu0 0.0
    %421 = vmatprep.subr.mxu0 0.0
    %422 = vmatpush2.msra.mxu0 0.0
    %423 = vmatprep.subr.mxu0 0.0
    %424 = vmatpush2.msra.mxu0 0.0
    %425 = vmatprep.subr.mxu0 0.0
    %426 = vmatpush2.msra.mxu0 0.0
    %427 = vmatprep.subr.mxu0 0.0
    %428 = vmatpush2.msra.mxu0 0.0
    %429 = vmatprep.subr.mxu0 0.0
    %430 = vmatpush2.msra.mxu0 0.0
    %431 = vmatprep.subr.mxu0 0.0
    %432 = vmatpush2.msra.mxu0 0.0
    %433 = vmatprep.subr.mxu0 0.0
    %434 = vmatpush2.msra.mxu0 0.0
    %435 = vmatprep.subr.mxu0 0.0
    %436 = vmatpush2.msra.mxu0 0.0
    %437 = vmatprep.subr.mxu0 0.0
    %438 = vmatpush2.msra.mxu0 0.0
    %439 = vmatprep.subr.mxu0 0.0
    %440 = vmatpush2.msra.mxu0 0.0
    %441 = vmatprep.subr.mxu0 0.0
    %442 = vmatpush2.msra.mxu0 0.0
    %443 = vmatprep.subr.mxu0 0.0
    %444 = vmatpush2.msra.mxu0 0.0
    %445 = vmatprep.mubr.f32.mxu0 0.0
    %446 = vmatmul.mubr.f32.gmra.mxu0 %v353
    %v447 = vpop.f32.mrf.mxu0
    %v448 = vadd.f32 %v380, %v447
    %v449 = vpop.f32.mrf.mxu0
    %450 = vmatprep.mubr.f32.mxu0 0.0
    %451 = vmatmul.mubr.f32.gmra.mxu0 %v354
    %v452 = vpop.f32.mrf.mxu0
    %v453 = vadd.f32 %v380, %v452
    %v454 = vpop.f32.mrf.mxu0
    %455 = vmatprep.mubr.f32.mxu0 0.0
    %456 = vmatmul.mubr.f32.gmra.mxu0 %v355
    %v457 = vpop.f32.mrf.mxu0
    %v458 = vadd.f32 %v380, %v457
    %v459 = vpop.f32.mrf.mxu0
    %460 = vmatprep.mubr.f32.mxu0 0.0
    %461 = vmatmul.mubr.f32.gmra.mxu0 %v356
    %v462 = vpop.f32.mrf.mxu0
    %v463 = vadd.f32 %v380, %v462
    %v464 = vpop.f32.mrf.mxu0
    %465 = vmatprep.mubr.f32.mxu0 0.0
    %466 = vmatmul.mubr.f32.gmra.mxu0 %v357
    %v467 = vpop.f32.mrf.mxu0
    %v468 = vadd.f32 %v380, %v467
    %v469 = vpop.f32.mrf.mxu0
    %470 = vmatprep.mubr.f32.mxu0 0.0
    %471 = vmatmul.mubr.f32.gmra.mxu0 %v358
    %v472 = vpop.f32.mrf.mxu0
    %v473 = vadd.f32 %v380, %v472
    %v474 = vpop.f32.mrf.mxu0
    %475 = vmatprep.mubr.f32.mxu0 0.0
    %476 = vmatmul.mubr.f32.gmra.mxu0 %v359
    %v477 = vpop.f32.mrf.mxu0
    %v478 = vadd.f32 %v380, %v477
    %v479 = vpop.f32.mrf.mxu0
    %480 = vmatprep.mubr.f32.mxu0 0.0
    %481 = vmatmul.mubr.f32.gmra.mxu0 %v360
    %v482 = vpop.f32.mrf.mxu0
    %v483 = vadd.f32 %v380, %v482
    %v484 = vpop.f32.mrf.mxu0
    %485 = vdwg.mxu0
    %v486 = vmax.f32 %v448, 0.0
    %v487 = vmax.f32 %v453, 0.0
    %v488 = vmax.f32 %v458, 0.0
    %v489 = vmax.f32 %v463, 0.0
    %v490 = vmax.f32 %v468, 0.0
    %v491 = vmax.f32 %v473, 0.0
    %v492 = vmax.f32 %v478, 0.0
    %v493 = vmax.f32 %v483, 0.0
    %v494 = vlaneseq
    %v495 = vshrl.u32 %v494, 7
    %v496 = vsub.s32 2, %v495
    %v497 = vrot.slane %v227, %v496
    %v498 = vmul.f32 %v486, %v497
    %v499 = vmul.f32 %v487, %v497
    %v500 = vmul.f32 %v488, %v497
    %v501 = vmul.f32 %v489, %v497
    %v502 = vmul.f32 %v490, %v497
    %v503 = vmul.f32 %v491, %v497
    %v504 = vmul.f32 %v492, %v497
    %v505 = vmul.f32 %v493, %v497
    %v506 = vlaneseq
    %v507 = vshrl.u32 %v506, 7
    %v508 = vsub.s32 3, %v507
    %v509 = vrot.slane %v227, %v508
    %v510 = vadd.f32 %v498, %v509
    %v511 = vadd.f32 %v499, %v509
    %v512 = vadd.f32 %v500, %v509
    %v513 = vadd.f32 %v501, %v509
    %v514 = vadd.f32 %v502, %v509
    %v515 = vadd.f32 %v503, %v509
    %v516 = vadd.f32 %v504, %v509
    %v517 = vadd.f32 %v505, %v509
    %518 = vst [vmem:[#allocation13] sm:$0xff] %v510
    %519 = vst [vmem:[#allocation13 + $0x8] sm:$0xff] %v511
    %520 = vst [vmem:[#allocation13 + $0x10] sm:$0xff] %v512
    %521 = vst [vmem:[#allocation13 + $0x18] sm:$0xff] %v513
    %522 = vst [vmem:[#allocation13 + $0x20] sm:$0xff] %v514
    %523 = vst [vmem:[#allocation13 + $0x28] sm:$0xff] %v515
    %524 = vst [vmem:[#allocation13 + $0x30] sm:$0xff] %v516
    %525 = vst [vmem:[#allocation13 + $0x38] sm:$0xff] %v517
    %v527 = vsel %vm149, %v116, 0
    %529 = vmatprep.subr.mxu0 0.0
    %530 = vmatpush1.msra.mxu0 0.0
    %531 = vmatprep.subr.mxu0 0.0
    %532 = vmatpush1.msra.mxu0 0.0
    %533 = vmatprep.subr.mxu0 0.0
    %534 = vmatpush1.msra.mxu0 0.0
    %535 = vmatprep.subr.mxu0 0.0
    %536 = vmatpush1.msra.mxu0 0.0
    %537 = vmatprep.subr.mxu0 0.0
    %538 = vmatpush1.msra.mxu0 0.0
    %539 = vmatprep.subr.mxu0 0.0
    %540 = vmatpush1.msra.mxu0 0.0
    %541 = vmatprep.subr.mxu0 0.0
    %542 = vmatpush1.msra.mxu0 0.0
    %543 = vmatprep.subr.mxu0 0.0
    %544 = vmatpush1.msra.mxu0 0.0
    %545 = vmatprep.subr.mxu0 0.0
    %546 = vmatpush1.msra.mxu0 %v517
    %547 = vmatprep.subr.mxu0 0.0
    %548 = vmatpush1.msra.mxu0 %v516
    %549 = vmatprep.subr.mxu0 0.0
    %550 = vmatpush1.msra.mxu0 %v515
    %551 = vmatprep.subr.mxu0 0.0
    %552 = vmatpush1.msra.mxu0 %v514
    %553 = vmatprep.subr.mxu0 0.0
    %554 = vmatpush1.msra.mxu0 %v513
    %555 = vmatprep.subr.mxu0 0.0
    %556 = vmatpush1.msra.mxu0 %v512
    %557 = vmatprep.subr.mxu0 0.0
    %558 = vmatpush1.msra.mxu0 %v511
    %559 = vmatprep.subr.mxu0 0.0
    %560 = vmatpush1.msra.mxu0 %v510
    %561 = vmatprep.subr.mxu0 0.0
    %562 = vmatpush2.msra.mxu0 0.0
    %563 = vmatprep.subr.mxu0 0.0
    %564 = vmatpush2.msra.mxu0 0.0
    %565 = vmatprep.subr.mxu0 0.0
    %566 = vmatpush2.msra.mxu0 0.0
    %567 = vmatprep.subr.mxu0 0.0
    %568 = vmatpush2.msra.mxu0 0.0
    %569 = vmatprep.subr.mxu0 0.0
    %570 = vmatpush2.msra.mxu0 0.0
    %571 = vmatprep.subr.mxu0 0.0
    %572 = vmatpush2.msra.mxu0 0.0
    %573 = vmatprep.subr.mxu0 0.0
    %574 = vmatpush2.msra.mxu0 0.0
    %575 = vmatprep.subr.mxu0 0.0
    %576 = vmatpush2.msra.mxu0 0.0
    %577 = vmatprep.subr.mxu0 0.0
    %578 = vmatpush2.msra.mxu0 0.0
    %579 = vmatprep.subr.mxu0 0.0
    %580 = vmatpush2.msra.mxu0 0.0
    %581 = vmatprep.subr.mxu0 0.0
    %582 = vmatpush2.msra.mxu0 0.0
    %583 = vmatprep.subr.mxu0 0.0
    %584 = vmatpush2.msra.mxu0 0.0
    %585 = vmatprep.subr.mxu0 0.0
    %586 = vmatpush2.msra.mxu0 0.0
    %587 = vmatprep.subr.mxu0 0.0
    %588 = vmatpush2.msra.mxu0 0.0
    %589 = vmatprep.subr.mxu0 0.0
    %590 = vmatpush2.msra.mxu0 0.0
    %591 = vmatprep.subr.mxu0 0.0
    %592 = vmatpush2.msra.mxu0 0.0
    %593 = vmatprep.mubr.f32.mxu0 0.0
    %594 = vmatmul.mubr.f32.gmra.mxu0 %v527
    %v595 = vpop.f32.mrf.mxu0
    %v596 = vadd.f32 0.0, %v595
    %v597 = vpop.f32.mrf.mxu0
    %598 = vdwg.mxu0
    %599 = vst [vmem:[#allocation14] sm:$0xff] %v596
    %v600 = vpack.c.bf16 %v511, %v510
    %v601 = vpack.c.bf16 %v513, %v512
    %v602 = vpack.c.bf16 %v515, %v514
    %v603 = vpack.c.bf16 %v517, %v516
    %604 = vmatprep.subr.bf16.mxu0 0
    %605 = vmatpush1.bf16.msra.mxu0 0
    %606 = vmatprep.subr.bf16.mxu0 0
    %607 = vmatpush1.bf16.msra.mxu0 0
    %608 = vmatprep.subr.bf16.mxu0 0
    %609 = vmatpush1.bf16.msra.mxu0 0
    %610 = vmatprep.subr.bf16.mxu0 0
    %611 = vmatpush1.bf16.msra.mxu0 0
    %612 = vmatprep.subr.bf16.mxu0 0
    %613 = vmatpush1.bf16.msra.mxu0 %v603
    %614 = vmatprep.subr.bf16.mxu0 0
    %615 = vmatpush1.bf16.msra.mxu0 %v602
    %616 = vmatprep.subr.bf16.mxu0 0
    %617 = vmatpush1.bf16.msra.mxu0 %v601
    %618 = vmatprep.subr.bf16.mxu0 0
    %619 = vmatpush1.bf16.msra.mxu0 %v600
    %620 = vmatprep.subr.bf16.mxu0 0
    %621 = vmatpush2.bf16.msra.mxu0 0
    %622 = vmatprep.subr.bf16.mxu0 0
    %623 = vmatpush2.bf16.msra.mxu0 0
    %624 = vmatprep.subr.bf16.mxu0 0
    %625 = vmatpush2.bf16.msra.mxu0 0
    %626 = vmatprep.subr.bf16.mxu0 0
    %627 = vmatpush2.bf16.msra.mxu0 0
    %628 = vmatprep.subr.bf16.mxu0 0
    %629 = vmatpush2.bf16.msra.mxu0 0
    %630 = vmatprep.subr.bf16.mxu0 0
    %631 = vmatpush2.bf16.msra.mxu0 0
    %632 = vmatprep.subr.bf16.mxu0 0
    %633 = vmatpush2.bf16.msra.mxu0 0
    %634 = vmatprep.subr.bf16.mxu0 0
    %635 = vmatpush2.bf16.msra.mxu0 0
    %636 = vmatprep.mubr.bf16.mxu0 0
    %637 = vmatmul.mubr.bf16.gmra.mxu0 %v151
    %v638 = vpop.f32.mrf.mxu0
    %v639 = vadd.f32 0.0, %v638
    %v640 = vpop.f32.mrf.mxu0
    %v641 = vpop.f32.mrf.mxu0
    %v642 = vadd.f32 0.0, %v641
    %v643 = vpop.f32.mrf.mxu0
    %644 = vmatprep.mubr.bf16.mxu0 0
    %645 = vmatmul.mubr.bf16.gmra.mxu0 %v154
    %v646 = vpop.f32.mrf.mxu0
    %v647 = vadd.f32 0.0, %v646
    %v648 = vpop.f32.mrf.mxu0
    %v649 = vpop.f32.mrf.mxu0
    %v650 = vadd.f32 0.0, %v649
    %v651 = vpop.f32.mrf.mxu0
    %652 = vmatprep.mubr.bf16.mxu0 0
    %653 = vmatmul.mubr.bf16.gmra.mxu0 %v157
    %v654 = vpop.f32.mrf.mxu0
    %v655 = vadd.f32 0.0, %v654
    %v656 = vpop.f32.mrf.mxu0
    %v657 = vpop.f32.mrf.mxu0
    %v658 = vadd.f32 0.0, %v657
    %v659 = vpop.f32.mrf.mxu0
    %660 = vmatprep.mubr.bf16.mxu0 0
    %661 = vmatmul.mubr.bf16.gmra.mxu0 %v160
    %v662 = vpop.f32.mrf.mxu0
    %v663 = vadd.f32 0.0, %v662
    %v664 = vpop.f32.mrf.mxu0
    %v665 = vpop.f32.mrf.mxu0
    %v666 = vadd.f32 0.0, %v665
    %v667 = vpop.f32.mrf.mxu0
    %668 = vdwg.mxu0
    %s669 = scalar_lea.vmem [#allocation11], 4
    %v670 = vld [vmem:[%s669] sm:$0xf]
    %s671 = scalar_lea.vmem [#allocation8], 128
    %v672 = vld [vmem:[%s671] sm:$0xff]
    %v673 = vld [vmem:[%s671 + $0x8] sm:$0xff]
    %v674 = vld [vmem:[%s671 + $0x10] sm:$0xff]
    %v675 = vld [vmem:[%s671 + $0x18] sm:$0xff]
    %v676 = vld [vmem:[%s671 + $0x20] sm:$0xff]
    %v677 = vld [vmem:[%s671 + $0x28] sm:$0xff]
    %v678 = vld [vmem:[%s671 + $0x30] sm:$0xff]
    %v679 = vld [vmem:[%s671 + $0x38] sm:$0xff]
    %v680 = vld [vmem:[%s671 + $0x40] sm:$0xff]
    %v681 = vld [vmem:[%s671 + $0x48] sm:$0xff]
    %v682 = vld [vmem:[%s671 + $0x50] sm:$0xff]
    %v683 = vld [vmem:[%s671 + $0x58] sm:$0xff]
    %v684 = vld [vmem:[%s671 + $0x60] sm:$0xff]
    %v685 = vld [vmem:[%s671 + $0x68] sm:$0xff]
    %v686 = vld [vmem:[%s671 + $0x70] sm:$0xff]
    %v687 = vld [vmem:[%s671 + $0x78] sm:$0xff]
    %v688 = vlaneseq
    %v689 = vshrl.u32 %v688, 7
    %v690 = vsub.s32 0, %v689
    %v691 = vrot.slane %v670, %v690
    %692 = vmatprep.subr.mxu0 0.0
    %693 = vmatpush1.msra.mxu0 %v687
    %694 = vmatprep.subr.mxu0 0.0
    %695 = vmatpush1.msra.mxu0 %v686
    %696 = vmatprep.subr.mxu0 0.0
    %697 = vmatpush1.msra.mxu0 %v685
    %698 = vmatprep.subr.mxu0 0.0
    %699 = vmatpush1.msra.mxu0 %v684
    %700 = vmatprep.subr.mxu0 0.0
    %701 = vmatpush1.msra.mxu0 %v683
    %702 = vmatprep.subr.mxu0 0.0
    %703 = vmatpush1.msra.mxu0 %v682
    %704 = vmatprep.subr.mxu0 0.0
    %705 = vmatpush1.msra.mxu0 %v681
    %706 = vmatprep.subr.mxu0 0.0
    %707 = vmatpush1.msra.mxu0 %v680
    %708 = vmatprep.subr.mxu0 0.0
    %709 = vmatpush1.msra.mxu0 %v679
    %710 = vmatprep.subr.mxu0 0.0
    %711 = vmatpush1.msra.mxu0 %v678
    %712 = vmatprep.subr.mxu0 0.0
    %713 = vmatpush1.msra.mxu0 %v677
    %714 = vmatprep.subr.mxu0 0.0
    %715 = vmatpush1.msra.mxu0 %v676
    %716 = vmatprep.subr.mxu0 0.0
    %717 = vmatpush1.msra.mxu0 %v675
    %718 = vmatprep.subr.mxu0 0.0
    %719 = vmatpush1.msra.mxu0 %v674
    %720 = vmatprep.subr.mxu0 0.0
    %721 = vmatpush1.msra.mxu0 %v673
    %722 = vmatprep.subr.mxu0 0.0
    %723 = vmatpush1.msra.mxu0 %v672
    %724 = vmatprep.subr.mxu0 0.0
    %725 = vmatpush2.msra.mxu0 0.0
    %726 = vmatprep.subr.mxu0 0.0
    %727 = vmatpush2.msra.mxu0 0.0
    %728 = vmatprep.subr.mxu0 0.0
    %729 = vmatpush2.msra.mxu0 0.0
    %730 = vmatprep.subr.mxu0 0.0
    %731 = vmatpush2.msra.mxu0 0.0
    %732 = vmatprep.subr.mxu0 0.0
    %733 = vmatpush2.msra.mxu0 0.0
    %734 = vmatprep.subr.mxu0 0.0
    %735 = vmatpush2.msra.mxu0 0.0
    %736 = vmatprep.subr.mxu0 0.0
    %737 = vmatpush2.msra.mxu0 0.0
    %738 = vmatprep.subr.mxu0 0.0
    %739 = vmatpush2.msra.mxu0 0.0
    %740 = vmatprep.subr.mxu0 0.0
    %741 = vmatpush2.msra.mxu0 0.0
    %742 = vmatprep.subr.mxu0 0.0
    %743 = vmatpush2.msra.mxu0 0.0
    %744 = vmatprep.subr.mxu0 0.0
    %745 = vmatpush2.msra.mxu0 0.0
    %746 = vmatprep.subr.mxu0 0.0
    %747 = vmatpush2.msra.mxu0 0.0
    %748 = vmatprep.subr.mxu0 0.0
    %749 = vmatpush2.msra.mxu0 0.0
    %750 = vmatprep.subr.mxu0 0.0
    %751 = vmatpush2.msra.mxu0 0.0
    %752 = vmatprep.subr.mxu0 0.0
    %753 = vmatpush2.msra.mxu0 0.0
    %754 = vmatprep.subr.mxu0 0.0
    %755 = vmatpush2.msra.mxu0 0.0
    %756 = vmatprep.mubr.f32.mxu0 0.0
    %757 = vmatmul.mubr.f32.gmra.mxu0 %v639
    %v758 = vpop.f32.mrf.mxu0
    %v759 = vadd.f32 %v691, %v758
    %v760 = vpop.f32.mrf.mxu0
    %761 = vmatprep.mubr.f32.mxu0 0.0
    %762 = vmatmul.mubr.f32.gmra.mxu0 %v642
    %v763 = vpop.f32.mrf.mxu0
    %v764 = vadd.f32 %v691, %v763
    %v765 = vpop.f32.mrf.mxu0
    %766 = vmatprep.mubr.f32.mxu0 0.0
    %767 = vmatmul.mubr.f32.gmra.mxu0 %v647
    %v768 = vpop.f32.mrf.mxu0
    %v769 = vadd.f32 %v691, %v768
    %v770 = vpop.f32.mrf.mxu0
    %771 = vmatprep.mubr.f32.mxu0 0.0
    %772 = vmatmul.mubr.f32.gmra.mxu0 %v650
    %v773 = vpop.f32.mrf.mxu0
    %v774 = vadd.f32 %v691, %v773
    %v775 = vpop.f32.mrf.mxu0
    %776 = vmatprep.mubr.f32.mxu0 0.0
    %777 = vmatmul.mubr.f32.gmra.mxu0 %v655
    %v778 = vpop.f32.mrf.mxu0
    %v779 = vadd.f32 %v691, %v778
    %v780 = vpop.f32.mrf.mxu0
    %781 = vmatprep.mubr.f32.mxu0 0.0
    %782 = vmatmul.mubr.f32.gmra.mxu0 %v658
    %v783 = vpop.f32.mrf.mxu0
    %v784 = vadd.f32 %v691, %v783
    %v785 = vpop.f32.mrf.mxu0
    %786 = vmatprep.mubr.f32.mxu0 0.0
    %787 = vmatmul.mubr.f32.gmra.mxu0 %v663
    %v788 = vpop.f32.mrf.mxu0
    %v789 = vadd.f32 %v691, %v788
    %v790 = vpop.f32.mrf.mxu0
    %791 = vmatprep.mubr.f32.mxu0 0.0
    %792 = vmatmul.mubr.f32.gmra.mxu0 %v666
    %v793 = vpop.f32.mrf.mxu0
    %v794 = vadd.f32 %v691, %v793
    %v795 = vpop.f32.mrf.mxu0
    %796 = vdwg.mxu0
    %v797 = vmax.f32 %v759, 0.0
    %v798 = vmax.f32 %v764, 0.0
    %v799 = vmax.f32 %v769, 0.0
    %v800 = vmax.f32 %v774, 0.0
    %v801 = vmax.f32 %v779, 0.0
    %v802 = vmax.f32 %v784, 0.0
    %v803 = vmax.f32 %v789, 0.0
    %v804 = vmax.f32 %v794, 0.0
    %s805 = scalar_lea.vmem [#allocation10], 128
    %v806 = vld [vmem:[%s805] sm:$0xff]
    %v807 = vld [vmem:[%s805 + $0x8] sm:$0xff]
    %v808 = vld [vmem:[%s805 + $0x10] sm:$0xff]
    %v809 = vld [vmem:[%s805 + $0x18] sm:$0xff]
    %v810 = vld [vmem:[%s805 + $0x20] sm:$0xff]
    %v811 = vld [vmem:[%s805 + $0x28] sm:$0xff]
    %v812 = vld [vmem:[%s805 + $0x30] sm:$0xff]
    %v813 = vld [vmem:[%s805 + $0x38] sm:$0xff]
    %v814 = vld [vmem:[%s805 + $0x40] sm:$0xff]
    %v815 = vld [vmem:[%s805 + $0x48] sm:$0xff]
    %v816 = vld [vmem:[%s805 + $0x50] sm:$0xff]
    %v817 = vld [vmem:[%s805 + $0x58] sm:$0xff]
    %v818 = vld [vmem:[%s805 + $0x60] sm:$0xff]
    %v819 = vld [vmem:[%s805 + $0x68] sm:$0xff]
    %v820 = vld [vmem:[%s805 + $0x70] sm:$0xff]
    %v821 = vld [vmem:[%s805 + $0x78] sm:$0xff]
    %v822 = vlaneseq
    %v823 = vshrl.u32 %v822, 7
    %v824 = vsub.s32 1, %v823
    %v825 = vrot.slane %v670, %v824
    %826 = vmatprep.subr.mxu0 0.0
    %827 = vmatpush1.msra.mxu0 %v821
    %828 = vmatprep.subr.mxu0 0.0
    %829 = vmatpush1.msra.mxu0 %v820
    %830 = vmatprep.subr.mxu0 0.0
    %831 = vmatpush1.msra.mxu0 %v819
    %832 = vmatprep.subr.mxu0 0.0
    %833 = vmatpush1.msra.mxu0 %v818
    %834 = vmatprep.subr.mxu0 0.0
    %835 = vmatpush1.msra.mxu0 %v817
    %836 = vmatprep.subr.mxu0 0.0
    %837 = vmatpush1.msra.mxu0 %v816
    %838 = vmatprep.subr.mxu0 0.0
    %839 = vmatpush1.msra.mxu0 %v815
    %840 = vmatprep.subr.mxu0 0.0
    %841 = vmatpush1.msra.mxu0 %v814
    %842 = vmatprep.subr.mxu0 0.0
    %843 = vmatpush1.msra.mxu0 %v813
    %844 = vmatprep.subr.mxu0 0.0
    %845 = vmatpush1.msra.mxu0 %v812
    %846 = vmatprep.subr.mxu0 0.0
    %847 = vmatpush1.msra.mxu0 %v811
    %848 = vmatprep.subr.mxu0 0.0
    %849 = vmatpush1.msra.mxu0 %v810
    %850 = vmatprep.subr.mxu0 0.0
    %851 = vmatpush1.msra.mxu0 %v809
    %852 = vmatprep.subr.mxu0 0.0
    %853 = vmatpush1.msra.mxu0 %v808
    %854 = vmatprep.subr.mxu0 0.0
    %855 = vmatpush1.msra.mxu0 %v807
    %856 = vmatprep.subr.mxu0 0.0
    %857 = vmatpush1.msra.mxu0 %v806
    %858 = vmatprep.subr.mxu0 0.0
    %859 = vmatpush2.msra.mxu0 0.0
    %860 = vmatprep.subr.mxu0 0.0
    %861 = vmatpush2.msra.mxu0 0.0
    %862 = vmatprep.subr.mxu0 0.0
    %863 = vmatpush2.msra.mxu0 0.0
    %864 = vmatprep.subr.mxu0 0.0
    %865 = vmatpush2.msra.mxu0 0.0
    %866 = vmatprep.subr.mxu0 0.0
    %867 = vmatpush2.msra.mxu0 0.0
    %868 = vmatprep.subr.mxu0 0.0
    %869 = vmatpush2.msra.mxu0 0.0
    %870 = vmatprep.subr.mxu0 0.0
    %871 = vmatpush2.msra.mxu0 0.0
    %872 = vmatprep.subr.mxu0 0.0
    %873 = vmatpush2.msra.mxu0 0.0
    %874 = vmatprep.subr.mxu0 0.0
    %875 = vmatpush2.msra.mxu0 0.0
    %876 = vmatprep.subr.mxu0 0.0
    %877 = vmatpush2.msra.mxu0 0.0
    %878 = vmatprep.subr.mxu0 0.0
    %879 = vmatpush2.msra.mxu0 0.0
    %880 = vmatprep.subr.mxu0 0.0
    %881 = vmatpush2.msra.mxu0 0.0
    %882 = vmatprep.subr.mxu0 0.0
    %883 = vmatpush2.msra.mxu0 0.0
    %884 = vmatprep.subr.mxu0 0.0
    %885 = vmatpush2.msra.mxu0 0.0
    %886 = vmatprep.subr.mxu0 0.0
    %887 = vmatpush2.msra.mxu0 0.0
    %888 = vmatprep.subr.mxu0 0.0
    %889 = vmatpush2.msra.mxu0 0.0
    %890 = vmatprep.mubr.f32.mxu0 0.0
    %891 = vmatmul.mubr.f32.gmra.mxu0 %v797
    %v892 = vpop.f32.mrf.mxu0
    %v893 = vadd.f32 %v825, %v892
    %v894 = vpop.f32.mrf.mxu0
    %895 = vmatprep.mubr.f32.mxu0 0.0
    %896 = vmatmul.mubr.f32.gmra.mxu0 %v798
    %v897 = vpop.f32.mrf.mxu0
    %v898 = vadd.f32 %v825, %v897
    %v899 = vpop.f32.mrf.mxu0
    %900 = vmatprep.mubr.f32.mxu0 0.0
    %901 = vmatmul.mubr.f32.gmra.mxu0 %v799
    %v902 = vpop.f32.mrf.mxu0
    %v903 = vadd.f32 %v825, %v902
    %v904 = vpop.f32.mrf.mxu0
    %905 = vmatprep.mubr.f32.mxu0 0.0
    %906 = vmatmul.mubr.f32.gmra.mxu0 %v800
    %v907 = vpop.f32.mrf.mxu0
    %v908 = vadd.f32 %v825, %v907
    %v909 = vpop.f32.mrf.mxu0
    %910 = vmatprep.mubr.f32.mxu0 0.0
    %911 = vmatmul.mubr.f32.gmra.mxu0 %v801
    %v912 = vpop.f32.mrf.mxu0
    %v913 = vadd.f32 %v825, %v912
    %v914 = vpop.f32.mrf.mxu0
    %915 = vmatprep.mubr.f32.mxu0 0.0
    %916 = vmatmul.mubr.f32.gmra.mxu0 %v802
    %v917 = vpop.f32.mrf.mxu0
    %v918 = vadd.f32 %v825, %v917
    %v919 = vpop.f32.mrf.mxu0
    %920 = vmatprep.mubr.f32.mxu0 0.0
    %921 = vmatmul.mubr.f32.gmra.mxu0 %v803
    %v922 = vpop.f32.mrf.mxu0
    %v923 = vadd.f32 %v825, %v922
    %v924 = vpop.f32.mrf.mxu0
    %925 = vmatprep.mubr.f32.mxu0 0.0
    %926 = vmatmul.mubr.f32.gmra.mxu0 %v804
    %v927 = vpop.f32.mrf.mxu0
    %v928 = vadd.f32 %v825, %v927
    %v929 = vpop.f32.mrf.mxu0
    %930 = vdwg.mxu0
    %v931 = vmax.f32 %v893, 0.0
    %v932 = vmax.f32 %v898, 0.0
    %v933 = vmax.f32 %v903, 0.0
    %v934 = vmax.f32 %v908, 0.0
    %v935 = vmax.f32 %v913, 0.0
    %v936 = vmax.f32 %v918, 0.0
    %v937 = vmax.f32 %v923, 0.0
    %v938 = vmax.f32 %v928, 0.0
    %v939 = vlaneseq
    %v940 = vshrl.u32 %v939, 7
    %v941 = vsub.s32 2, %v940
    %v942 = vrot.slane %v670, %v941
    %v943 = vmul.f32 %v931, %v942
    %v944 = vmul.f32 %v932, %v942
    %v945 = vmul.f32 %v933, %v942
    %v946 = vmul.f32 %v934, %v942
    %v947 = vmul.f32 %v935, %v942
    %v948 = vmul.f32 %v936, %v942
    %v949 = vmul.f32 %v937, %v942
    %v950 = vmul.f32 %v938, %v942
    %v951 = vlaneseq
    %v952 = vshrl.u32 %v951, 7
    %v953 = vsub.s32 3, %v952
    %v954 = vrot.slane %v670, %v953
    %v955 = vadd.f32 %v943, %v954
    %v956 = vadd.f32 %v944, %v954
    %v957 = vadd.f32 %v945, %v954
    %v958 = vadd.f32 %v946, %v954
    %v959 = vadd.f32 %v947, %v954
    %v960 = vadd.f32 %v948, %v954
    %v961 = vadd.f32 %v949, %v954
    %v962 = vadd.f32 %v950, %v954
    %s963 = scalar_lea.vmem [#allocation13], 64
    %964 = vst [vmem:[%s963] sm:$0xff] %v955
    %965 = vst [vmem:[%s963 + $0x8] sm:$0xff] %v956
    %966 = vst [vmem:[%s963 + $0x10] sm:$0xff] %v957
    %967 = vst [vmem:[%s963 + $0x18] sm:$0xff] %v958
    %968 = vst [vmem:[%s963 + $0x20] sm:$0xff] %v959
    %969 = vst [vmem:[%s963 + $0x28] sm:$0xff] %v960
    %970 = vst [vmem:[%s963 + $0x30] sm:$0xff] %v961
    %971 = vst [vmem:[%s963 + $0x38] sm:$0xff] %v962
    %972 = vmatprep.subr.mxu0 0.0
    %973 = vmatpush1.msra.mxu0 0.0
    %974 = vmatprep.subr.mxu0 0.0
    %975 = vmatpush1.msra.mxu0 0.0
    %976 = vmatprep.subr.mxu0 0.0
    %977 = vmatpush1.msra.mxu0 0.0
    %978 = vmatprep.subr.mxu0 0.0
    %979 = vmatpush1.msra.mxu0 0.0
    %980 = vmatprep.subr.mxu0 0.0
    %981 = vmatpush1.msra.mxu0 0.0
    %982 = vmatprep.subr.mxu0 0.0
    %983 = vmatpush1.msra.mxu0 0.0
    %984 = vmatprep.subr.mxu0 0.0
    %985 = vmatpush1.msra.mxu0 0.0
    %986 = vmatprep.subr.mxu0 0.0
    %987 = vmatpush1.msra.mxu0 0.0
    %988 = vmatprep.subr.mxu0 0.0
    %989 = vmatpush1.msra.mxu0 %v962
    %990 = vmatprep.subr.mxu0 0.0
    %991 = vmatpush1.msra.mxu0 %v961
    %992 = vmatprep.subr.mxu0 0.0
    %993 = vmatpush1.msra.mxu0 %v960
    %994 = vmatprep.subr.mxu0 0.0
    %995 = vmatpush1.msra.mxu0 %v959
    %996 = vmatprep.subr.mxu0 0.0
    %997 = vmatpush1.msra.mxu0 %v958
    %998 = vmatprep.subr.mxu0 0.0
    %999 = vmatpush1.msra.mxu0 %v957
    %1000 = vmatprep.subr.mxu0 0.0
    %1001 = vmatpush1.msra.mxu0 %v956
    %1002 = vmatprep.subr.mxu0 0.0
    %1003 = vmatpush1.msra.mxu0 %v955
    %1004 = vmatprep.subr.mxu0 0.0
    %1005 = vmatpush2.msra.mxu0 0.0
    %1006 = vmatprep.subr.mxu0 0.0
    %1007 = vmatpush2.msra.mxu0 0.0
    %1008 = vmatprep.subr.mxu0 0.0
    %1009 = vmatpush2.msra.mxu0 0.0
    %1010 = vmatprep.subr.mxu0 0.0
    %1011 = vmatpush2.msra.mxu0 0.0
    %1012 = vmatprep.subr.mxu0 0.0
    %1013 = vmatpush2.msra.mxu0 0.0
    %1014 = vmatprep.subr.mxu0 0.0
    %1015 = vmatpush2.msra.mxu0 0.0
    %1016 = vmatprep.subr.mxu0 0.0
    %1017 = vmatpush2.msra.mxu0 0.0
    %1018 = vmatprep.subr.mxu0 0.0
    %1019 = vmatpush2.msra.mxu0 0.0
    %1020 = vmatprep.subr.mxu0 0.0
    %1021 = vmatpush2.msra.mxu0 0.0
    %1022 = vmatprep.subr.mxu0 0.0
    %1023 = vmatpush2.msra.mxu0 0.0
    %1024 = vmatprep.subr.mxu0 0.0
    %1025 = vmatpush2.msra.mxu0 0.0
    %1026 = vmatprep.subr.mxu0 0.0
    %1027 = vmatpush2.msra.mxu0 0.0
    %1028 = vmatprep.subr.mxu0 0.0
    %1029 = vmatpush2.msra.mxu0 0.0
    %1030 = vmatprep.subr.mxu0 0.0
    %1031 = vmatpush2.msra.mxu0 0.0
    %1032 = vmatprep.subr.mxu0 0.0
    %1033 = vmatpush2.msra.mxu0 0.0
    %1034 = vmatprep.subr.mxu0 0.0
    %1035 = vmatpush2.msra.mxu0 0.0
    %1036 = vmatprep.mubr.f32.mxu0 0.0
    %1037 = vmatmul.mubr.f32.gmra.mxu0 %v527
    %v1038 = vpop.f32.mrf.mxu0
    %v1039 = vadd.f32 0.0, %v1038
    %v1040 = vpop.f32.mrf.mxu0
    %1041 = vdwg.mxu0
    %s1042 = scalar_lea.vmem [#allocation14], 8
    %1043 = vst [vmem:[%s1042] sm:$0xff] %v1039
    %v1044 = vpack.c.bf16 %v956, %v955
    %v1045 = vpack.c.bf16 %v958, %v957
    %v1046 = vpack.c.bf16 %v960, %v959
    %v1047 = vpack.c.bf16 %v962, %v961
    %1048 = vmatprep.subr.bf16.mxu0 0
    %1049 = vmatpush1.bf16.msra.mxu0 0
    %1050 = vmatprep.subr.bf16.mxu0 0
    %1051 = vmatpush1.bf16.msra.mxu0 0
    %1052 = vmatprep.subr.bf16.mxu0 0
    %1053 = vmatpush1.bf16.msra.mxu0 0
    %1054 = vmatprep.subr.bf16.mxu0 0
    %1055 = vmatpush1.bf16.msra.mxu0 0
    %1056 = vmatprep.subr.bf16.mxu0 0
    %1057 = vmatpush1.bf16.msra.mxu0 %v1047
    %1058 = vmatprep.subr.bf16.mxu0 0
    %1059 = vmatpush1.bf16.msra.mxu0 %v1046
    %1060 = vmatprep.subr.bf16.mxu0 0
    %1061 = vmatpush1.bf16.msra.mxu0 %v1045
    %1062 = vmatprep.subr.bf16.mxu0 0
    %1063 = vmatpush1.bf16.msra.mxu0 %v1044
    %1064 = vmatprep.subr.bf16.mxu0 0
    %1065 = vmatpush2.bf16.msra.mxu0 0
    %1066 = vmatprep.subr.bf16.mxu0 0
    %1067 = vmatpush2.bf16.msra.mxu0 0
    %1068 = vmatprep.subr.bf16.mxu0 0
    %1069 = vmatpush2.bf16.msra.mxu0 0
    %1070 = vmatprep.subr.bf16.mxu0 0
    %1071 = vmatpush2.bf16.msra.mxu0 0
    %1072 = vmatprep.subr.bf16.mxu0 0
    %1073 = vmatpush2.bf16.msra.mxu0 0
    %1074 = vmatprep.subr.bf16.mxu0 0
    %1075 = vmatpush2.bf16.msra.mxu0 0
    %1076 = vmatprep.subr.bf16.mxu0 0
    %1077 = vmatpush2.bf16.msra.mxu0 0
    %1078 = vmatprep.subr.bf16.mxu0 0
    %1079 = vmatpush2.bf16.msra.mxu0 0
    %1080 = vmatprep.mubr.bf16.mxu0 0
    %1081 = vmatmul.mubr.bf16.gmra.mxu0 %v151
    %v1082 = vpop.f32.mrf.mxu0
    %v1083 = vadd.f32 0.0, %v1082
    %v1084 = vpop.f32.mrf.mxu0
    %v1085 = vpop.f32.mrf.mxu0
    %v1086 = vadd.f32 0.0, %v1085
    %v1087 = vpop.f32.mrf.mxu0
    %1088 = vmatprep.mubr.bf16.mxu0 0
    %1089 = vmatmul.mubr.bf16.gmra.mxu0 %v154
    %v1090 = vpop.f32.mrf.mxu0
    %v1091 = vadd.f32 0.0, %v1090
    %v1092 = vpop.f32.mrf.mxu0
    %v1093 = vpop.f32.mrf.mxu0
    %v1094 = vadd.f32 0.0, %v1093
    %v1095 = vpop.f32.mrf.mxu0
    %1096 = vmatprep.mubr.bf16.mxu0 0
    %1097 = vmatmul.mubr.bf16.gmra.mxu0 %v157
    %v1098 = vpop.f32.mrf.mxu0
    %v1099 = vadd.f32 0.0, %v1098
    %v1100 = vpop.f32.mrf.mxu0
    %v1101 = vpop.f32.mrf.mxu0
    %v1102 = vadd.f32 0.0, %v1101
    %v1103 = vpop.f32.mrf.mxu0
    %1104 = vmatprep.mubr.bf16.mxu0 0
    %1105 = vmatmul.mubr.bf16.gmra.mxu0 %v160
    %v1106 = vpop.f32.mrf.mxu0
    %v1107 = vadd.f32 0.0, %v1106
    %v1108 = vpop.f32.mrf.mxu0
    %v1109 = vpop.f32.mrf.mxu0
    %v1110 = vadd.f32 0.0, %v1109
    %v1111 = vpop.f32.mrf.mxu0
    %1112 = vdwg.mxu0
    %s1113 = scalar_lea.vmem [#allocation11], 8
    %v1114 = vld [vmem:[%s1113] sm:$0xf]
    %s1115 = scalar_lea.vmem [#allocation8], 256
    %v1116 = vld [vmem:[%s1115] sm:$0xff]
    %v1117 = vld [vmem:[%s1115 + $0x8] sm:$0xff]
    %v1118 = vld [vmem:[%s1115 + $0x10] sm:$0xff]
    %v1119 = vld [vmem:[%s1115 + $0x18] sm:$0xff]
    %v1120 = vld [vmem:[%s1115 + $0x20] sm:$0xff]
    %v1121 = vld [vmem:[%s1115 + $0x28] sm:$0xff]
    %v1122 = vld [vmem:[%s1115 + $0x30] sm:$0xff]
    %v1123 = vld [vmem:[%s1115 + $0x38] sm:$0xff]
    %v1124 = vld [vmem:[%s1115 + $0x40] sm:$0xff]
    %v1125 = vld [vmem:[%s1115 + $0x48] sm:$0xff]
    %v1126 = vld [vmem:[%s1115 + $0x50] sm:$0xff]
    %v1127 = vld [vmem:[%s1115 + $0x58] sm:$0xff]
    %v1128 = vld [vmem:[%s1115 + $0x60] sm:$0xff]
    %v1129 = vld [vmem:[%s1115 + $0x68] sm:$0xff]
    %v1130 = vld [vmem:[%s1115 + $0x70] sm:$0xff]
    %v1131 = vld [vmem:[%s1115 + $0x78] sm:$0xff]
    %v1132 = vlaneseq
    %v1133 = vshrl.u32 %v1132, 7
    %v1134 = vsub.s32 0, %v1133
    %v1135 = vrot.slane %v1114, %v1134
    %1136 = vmatprep.subr.mxu0 0.0
    %1137 = vmatpush1.msra.mxu0 %v1131
    %1138 = vmatprep.subr.mxu0 0.0
    %1139 = vmatpush1.msra.mxu0 %v1130
    %1140 = vmatprep.subr.mxu0 0.0
    %1141 = vmatpush1.msra.mxu0 %v1129
    %1142 = vmatprep.subr.mxu0 0.0
    %1143 = vmatpush1.msra.mxu0 %v1128
    %1144 = vmatprep.subr.mxu0 0.0
    %1145 = vmatpush1.msra.mxu0 %v1127
    %1146 = vmatprep.subr.mxu0 0.0
    %1147 = vmatpush1.msra.mxu0 %v1126
    %1148 = vmatprep.subr.mxu0 0.0
    %1149 = vmatpush1.msra.mxu0 %v1125
    %1150 = vmatprep.subr.mxu0 0.0
    %1151 = vmatpush1.msra.mxu0 %v1124
    %1152 = vmatprep.subr.mxu0 0.0
    %1153 = vmatpush1.msra.mxu0 %v1123
    %1154 = vmatprep.subr.mxu0 0.0
    %1155 = vmatpush1.msra.mxu0 %v1122
    %1156 = vmatprep.subr.mxu0 0.0
    %1157 = vmatpush1.msra.mxu0 %v1121
    %1158 = vmatprep.subr.mxu0 0.0
    %1159 = vmatpush1.msra.mxu0 %v1120
    %1160 = vmatprep.subr.mxu0 0.0
    %1161 = vmatpush1.msra.mxu0 %v1119
    %1162 = vmatprep.subr.mxu0 0.0
    %1163 = vmatpush1.msra.mxu0 %v1118
    %1164 = vmatprep.subr.mxu0 0.0
    %1165 = vmatpush1.msra.mxu0 %v1117
    %1166 = vmatprep.subr.mxu0 0.0
    %1167 = vmatpush1.msra.mxu0 %v1116
    %1168 = vmatprep.subr.mxu0 0.0
    %1169 = vmatpush2.msra.mxu0 0.0
    %1170 = vmatprep.subr.mxu0 0.0
    %1171 = vmatpush2.msra.mxu0 0.0
    %1172 = vmatprep.subr.mxu0 0.0
    %1173 = vmatpush2.msra.mxu0 0.0
    %1174 = vmatprep.subr.mxu0 0.0
    %1175 = vmatpush2.msra.mxu0 0.0
    %1176 = vmatprep.subr.mxu0 0.0
    %1177 = vmatpush2.msra.mxu0 0.0
    %1178 = vmatprep.subr.mxu0 0.0
    %1179 = vmatpush2.msra.mxu0 0.0
    %1180 = vmatprep.subr.mxu0 0.0
    %1181 = vmatpush2.msra.mxu0 0.0
    %1182 = vmatprep.subr.mxu0 0.0
    %1183 = vmatpush2.msra.mxu0 0.0
    %1184 = vmatprep.subr.mxu0 0.0
    %1185 = vmatpush2.msra.mxu0 0.0
    %1186 = vmatprep.subr.mxu0 0.0
    %1187 = vmatpush2.msra.mxu0 0.0
    %1188 = vmatprep.subr.mxu0 0.0
    %1189 = vmatpush2.msra.mxu0 0.0
    %1190 = vmatprep.subr.mxu0 0.0
    %1191 = vmatpush2.msra.mxu0 0.0
    %1192 = vmatprep.subr.mxu0 0.0
    %1193 = vmatpush2.msra.mxu0 0.0
    %1194 = vmatprep.subr.mxu0 0.0
    %1195 = vmatpush2.msra.mxu0 0.0
    %1196 = vmatprep.subr.mxu0 0.0
    %1197 = vmatpush2.msra.mxu0 0.0
    %1198 = vmatprep.subr.mxu0 0.0
    %1199 = vmatpush2.msra.mxu0 0.0
    %1200 = vmatprep.mubr.f32.mxu0 0.0
    %1201 = vmatmul.mubr.f32.gmra.mxu0 %v1083
    %v1202 = vpop.f32.mrf.mxu0
    %v1203 = vadd.f32 %v1135, %v1202
    %v1204 = vpop.f32.mrf.mxu0
    %1205 = vmatprep.mubr.f32.mxu0 0.0
    %1206 = vmatmul.mubr.f32.gmra.mxu0 %v1086
    %v1207 = vpop.f32.mrf.mxu0
    %v1208 = vadd.f32 %v1135, %v1207
    %v1209 = vpop.f32.mrf.mxu0
    %1210 = vmatprep.mubr.f32.mxu0 0.0
    %1211 = vmatmul.mubr.f32.gmra.mxu0 %v1091
    %v1212 = vpop.f32.mrf.mxu0
    %v1213 = vadd.f32 %v1135, %v1212
    %v1214 = vpop.f32.mrf.mxu0
    %1215 = vmatprep.mubr.f32.mxu0 0.0
    %1216 = vmatmul.mubr.f32.gmra.mxu0 %v1094
    %v1217 = vpop.f32.mrf.mxu0
    %v1218 = vadd.f32 %v1135, %v1217
    %v1219 = vpop.f32.mrf.mxu0
    %1220 = vmatprep.mubr.f32.mxu0 0.0
    %1221 = vmatmul.mubr.f32.gmra.mxu0 %v1099
    %v1222 = vpop.f32.mrf.mxu0
    %v1223 = vadd.f32 %v1135, %v1222
    %v1224 = vpop.f32.mrf.mxu0
    %1225 = vmatprep.mubr.f32.mxu0 0.0
    %1226 = vmatmul.mubr.f32.gmra.mxu0 %v1102
    %v1227 = vpop.f32.mrf.mxu0
    %v1228 = vadd.f32 %v1135, %v1227
    %v1229 = vpop.f32.mrf.mxu0
    %1230 = vmatprep.mubr.f32.mxu0 0.0
    %1231 = vmatmul.mubr.f32.gmra.mxu0 %v1107
    %v1232 = vpop.f32.mrf.mxu0
    %v1233 = vadd.f32 %v1135, %v1232
    %v1234 = vpop.f32.mrf.mxu0
    %1235 = vmatprep.mubr.f32.mxu0 0.0
    %1236 = vmatmul.mubr.f32.gmra.mxu0 %v1110
    %v1237 = vpop.f32.mrf.mxu0
    %v1238 = vadd.f32 %v1135, %v1237
    %v1239 = vpop.f32.mrf.mxu0
    %1240 = vdwg.mxu0
    %v1241 = vmax.f32 %v1203, 0.0
    %v1242 = vmax.f32 %v1208, 0.0
    %v1243 = vmax.f32 %v1213, 0.0
    %v1244 = vmax.f32 %v1218, 0.0
    %v1245 = vmax.f32 %v1223, 0.0
    %v1246 = vmax.f32 %v1228, 0.0
    %v1247 = vmax.f32 %v1233, 0.0
    %v1248 = vmax.f32 %v1238, 0.0
    %s1249 = scalar_lea.vmem [#allocation10], 256
    %v1250 = vld [vmem:[%s1249] sm:$0xff]
    %v1251 = vld [vmem:[%s1249 + $0x8] sm:$0xff]
    %v1252 = vld [vmem:[%s1249 + $0x10] sm:$0xff]
    %v1253 = vld [vmem:[%s1249 + $0x18] sm:$0xff]
    %v1254 = vld [vmem:[%s1249 + $0x20] sm:$0xff]
    %v1255 = vld [vmem:[%s1249 + $0x28] sm:$0xff]
    %v1256 = vld [vmem:[%s1249 + $0x30] sm:$0xff]
    %v1257 = vld [vmem:[%s1249 + $0x38] sm:$0xff]
    %v1258 = vld [vmem:[%s1249 + $0x40] sm:$0xff]
    %v1259 = vld [vmem:[%s1249 + $0x48] sm:$0xff]
    %v1260 = vld [vmem:[%s1249 + $0x50] sm:$0xff]
    %v1261 = vld [vmem:[%s1249 + $0x58] sm:$0xff]
    %v1262 = vld [vmem:[%s1249 + $0x60] sm:$0xff]
    %v1263 = vld [vmem:[%s1249 + $0x68] sm:$0xff]
    %v1264 = vld [vmem:[%s1249 + $0x70] sm:$0xff]
    %v1265 = vld [vmem:[%s1249 + $0x78] sm:$0xff]
    %v1266 = vlaneseq
    %v1267 = vshrl.u32 %v1266, 7
    %v1268 = vsub.s32 1, %v1267
    %v1269 = vrot.slane %v1114, %v1268
    %1270 = vmatprep.subr.mxu0 0.0
    %1271 = vmatpush1.msra.mxu0 %v1265
    %1272 = vmatprep.subr.mxu0 0.0
    %1273 = vmatpush1.msra.mxu0 %v1264
    %1274 = vmatprep.subr.mxu0 0.0
    %1275 = vmatpush1.msra.mxu0 %v1263
    %1276 = vmatprep.subr.mxu0 0.0
    %1277 = vmatpush1.msra.mxu0 %v1262
    %1278 = vmatprep.subr.mxu0 0.0
    %1279 = vmatpush1.msra.mxu0 %v1261
    %1280 = vmatprep.subr.mxu0 0.0
    %1281 = vmatpush1.msra.mxu0 %v1260
    %1282 = vmatprep.subr.mxu0 0.0
    %1283 = vmatpush1.msra.mxu0 %v1259
    %1284 = vmatprep.subr.mxu0 0.0
    %1285 = vmatpush1.msra.mxu0 %v1258
    %1286 = vmatprep.subr.mxu0 0.0
    %1287 = vmatpush1.msra.mxu0 %v1257
    %1288 = vmatprep.subr.mxu0 0.0
    %1289 = vmatpush1.msra.mxu0 %v1256
    %1290 = vmatprep.subr.mxu0 0.0
    %1291 = vmatpush1.msra.mxu0 %v1255
    %1292 = vmatprep.subr.mxu0 0.0
    %1293 = vmatpush1.msra.mxu0 %v1254
    %1294 = vmatprep.subr.mxu0 0.0
    %1295 = vmatpush1.msra.mxu0 %v1253
    %1296 = vmatprep.subr.mxu0 0.0
    %1297 = vmatpush1.msra.mxu0 %v1252
    %1298 = vmatprep.subr.mxu0 0.0
    %1299 = vmatpush1.msra.mxu0 %v1251
    %1300 = vmatprep.subr.mxu0 0.0
    %1301 = vmatpush1.msra.mxu0 %v1250
    %1302 = vmatprep.subr.mxu0 0.0
    %1303 = vmatpush2.msra.mxu0 0.0
    %1304 = vmatprep.subr.mxu0 0.0
    %1305 = vmatpush2.msra.mxu0 0.0
    %1306 = vmatprep.subr.mxu0 0.0
    %1307 = vmatpush2.msra.mxu0 0.0
    %1308 = vmatprep.subr.mxu0 0.0
    %1309 = vmatpush2.msra.mxu0 0.0
    %1310 = vmatprep.subr.mxu0 0.0
    %1311 = vmatpush2.msra.mxu0 0.0
    %1312 = vmatprep.subr.mxu0 0.0
    %1313 = vmatpush2.msra.mxu0 0.0
    %1314 = vmatprep.subr.mxu0 0.0
    %1315 = vmatpush2.msra.mxu0 0.0
    %1316 = vmatprep.subr.mxu0 0.0
    %1317 = vmatpush2.msra.mxu0 0.0
    %1318 = vmatprep.subr.mxu0 0.0
    %1319 = vmatpush2.msra.mxu0 0.0
    %1320 = vmatprep.subr.mxu0 0.0
    %1321 = vmatpush2.msra.mxu0 0.0
    %1322 = vmatprep.subr.mxu0 0.0
    %1323 = vmatpush2.msra.mxu0 0.0
    %1324 = vmatprep.subr.mxu0 0.0
    %1325 = vmatpush2.msra.mxu0 0.0
    %1326 = vmatprep.subr.mxu0 0.0
    %1327 = vmatpush2.msra.mxu0 0.0
    %1328 = vmatprep.subr.mxu0 0.0
    %1329 = vmatpush2.msra.mxu0 0.0
    %1330 = vmatprep.subr.mxu0 0.0
    %1331 = vmatpush2.msra.mxu0 0.0
    %1332 = vmatprep.subr.mxu0 0.0
    %1333 = vmatpush2.msra.mxu0 0.0
    %1334 = vmatprep.mubr.f32.mxu0 0.0
    %1335 = vmatmul.mubr.f32.gmra.mxu0 %v1241
    %v1336 = vpop.f32.mrf.mxu0
    %v1337 = vadd.f32 %v1269, %v1336
    %v1338 = vpop.f32.mrf.mxu0
    %1339 = vmatprep.mubr.f32.mxu0 0.0
    %1340 = vmatmul.mubr.f32.gmra.mxu0 %v1242
    %v1341 = vpop.f32.mrf.mxu0
    %v1342 = vadd.f32 %v1269, %v1341
    %v1343 = vpop.f32.mrf.mxu0
    %1344 = vmatprep.mubr.f32.mxu0 0.0
    %1345 = vmatmul.mubr.f32.gmra.mxu0 %v1243
    %v1346 = vpop.f32.mrf.mxu0
    %v1347 = vadd.f32 %v1269, %v1346
    %v1348 = vpop.f32.mrf.mxu0
    %1349 = vmatprep.mubr.f32.mxu0 0.0
    %1350 = vmatmul.mubr.f32.gmra.mxu0 %v1244
    %v1351 = vpop.f32.mrf.mxu0
    %v1352 = vadd.f32 %v1269, %v1351
    %v1353 = vpop.f32.mrf.mxu0
    %1354 = vmatprep.mubr.f32.mxu0 0.0
    %1355 = vmatmul.mubr.f32.gmra.mxu0 %v1245
    %v1356 = vpop.f32.mrf.mxu0
    %v1357 = vadd.f32 %v1269, %v1356
    %v1358 = vpop.f32.mrf.mxu0
    %1359 = vmatprep.mubr.f32.mxu0 0.0
    %1360 = vmatmul.mubr.f32.gmra.mxu0 %v1246
    %v1361 = vpop.f32.mrf.mxu0
    %v1362 = vadd.f32 %v1269, %v1361
    %v1363 = vpop.f32.mrf.mxu0
    %1364 = vmatprep.mubr.f32.mxu0 0.0
    %1365 = vmatmul.mubr.f32.gmra.mxu0 %v1247
    %v1366 = vpop.f32.mrf.mxu0
    %v1367 = vadd.f32 %v1269, %v1366
    %v1368 = vpop.f32.mrf.mxu0
    %1369 = vmatprep.mubr.f32.mxu0 0.0
    %1370 = vmatmul.mubr.f32.gmra.mxu0 %v1248
    %v1371 = vpop.f32.mrf.mxu0
    %v1372 = vadd.f32 %v1269, %v1371
    %v1373 = vpop.f32.mrf.mxu0
    %1374 = vdwg.mxu0
    %v1375 = vmax.f32 %v1337, 0.0
    %v1376 = vmax.f32 %v1342, 0.0
    %v1377 = vmax.f32 %v1347, 0.0
    %v1378 = vmax.f32 %v1352, 0.0
    %v1379 = vmax.f32 %v1357, 0.0
    %v1380 = vmax.f32 %v1362, 0.0
    %v1381 = vmax.f32 %v1367, 0.0
    %v1382 = vmax.f32 %v1372, 0.0
    %v1383 = vlaneseq
    %v1384 = vshrl.u32 %v1383, 7
    %v1385 = vsub.s32 2, %v1384
    %v1386 = vrot.slane %v1114, %v1385
    %v1387 = vmul.f32 %v1375, %v1386
    %v1388 = vmul.f32 %v1376, %v1386
    %v1389 = vmul.f32 %v1377, %v1386
    %v1390 = vmul.f32 %v1378, %v1386
    %v1391 = vmul.f32 %v1379, %v1386
    %v1392 = vmul.f32 %v1380, %v1386
    %v1393 = vmul.f32 %v1381, %v1386
    %v1394 = vmul.f32 %v1382, %v1386
    %v1395 = vlaneseq
    %v1396 = vshrl.u32 %v1395, 7
    %v1397 = vsub.s32 3, %v1396
    %v1398 = vrot.slane %v1114, %v1397
    %v1399 = vadd.f32 %v1387, %v1398
    %v1400 = vadd.f32 %v1388, %v1398
    %v1401 = vadd.f32 %v1389, %v1398
    %v1402 = vadd.f32 %v1390, %v1398
    %v1403 = vadd.f32 %v1391, %v1398
    %v1404 = vadd.f32 %v1392, %v1398
    %v1405 = vadd.f32 %v1393, %v1398
    %v1406 = vadd.f32 %v1394, %v1398
    %s1407 = scalar_lea.vmem [#allocation13], 128
    %1408 = vst [vmem:[%s1407] sm:$0xff] %v1399
    %1409 = vst [vmem:[%s1407 + $0x8] sm:$0xff] %v1400
    %1410 = vst [vmem:[%s1407 + $0x10] sm:$0xff] %v1401
    %1411 = vst [vmem:[%s1407 + $0x18] sm:$0xff] %v1402
    %1412 = vst [vmem:[%s1407 + $0x20] sm:$0xff] %v1403
    %1413 = vst [vmem:[%s1407 + $0x28] sm:$0xff] %v1404
    %1414 = vst [vmem:[%s1407 + $0x30] sm:$0xff] %v1405
    %1415 = vst [vmem:[%s1407 + $0x38] sm:$0xff] %v1406
    %1416 = vmatprep.subr.mxu0 0.0
    %1417 = vmatpush1.msra.mxu0 0.0
    %1418 = vmatprep.subr.mxu0 0.0
    %1419 = vmatpush1.msra.mxu0 0.0
    %1420 = vmatprep.subr.mxu0 0.0
    %1421 = vmatpush1.msra.mxu0 0.0
    %1422 = vmatprep.subr.mxu0 0.0
    %1423 = vmatpush1.msra.mxu0 0.0
    %1424 = vmatprep.subr.mxu0 0.0
    %1425 = vmatpush1.msra.mxu0 0.0
    %1426 = vmatprep.subr.mxu0 0.0
    %1427 = vmatpush1.msra.mxu0 0.0
    %1428 = vmatprep.subr.mxu0 0.0
    %1429 = vmatpush1.msra.mxu0 0.0
    %1430 = vmatprep.subr.mxu0 0.0
    %1431 = vmatpush1.msra.mxu0 0.0
    %1432 = vmatprep.subr.mxu0 0.0
    %1433 = vmatpush1.msra.mxu0 %v1406
    %1434 = vmatprep.subr.mxu0 0.0
    %1435 = vmatpush1.msra.mxu0 %v1405
    %1436 = vmatprep.subr.mxu0 0.0
    %1437 = vmatpush1.msra.mxu0 %v1404
    %1438 = vmatprep.subr.mxu0 0.0
    %1439 = vmatpush1.msra.mxu0 %v1403
    %1440 = vmatprep.subr.mxu0 0.0
    %1441 = vmatpush1.msra.mxu0 %v1402
    %1442 = vmatprep.subr.mxu0 0.0
    %1443 = vmatpush1.msra.mxu0 %v1401
    %1444 = vmatprep.subr.mxu0 0.0
    %1445 = vmatpush1.msra.mxu0 %v1400
    %1446 = vmatprep.subr.mxu0 0.0
    %1447 = vmatpush1.msra.mxu0 %v1399
    %1448 = vmatprep.subr.mxu0 0.0
    %1449 = vmatpush2.msra.mxu0 0.0
    %1450 = vmatprep.subr.mxu0 0.0
    %1451 = vmatpush2.msra.mxu0 0.0
    %1452 = vmatprep.subr.mxu0 0.0
    %1453 = vmatpush2.msra.mxu0 0.0
    %1454 = vmatprep.subr.mxu0 0.0
    %1455 = vmatpush2.msra.mxu0 0.0
    %1456 = vmatprep.subr.mxu0 0.0
    %1457 = vmatpush2.msra.mxu0 0.0
    %1458 = vmatprep.subr.mxu0 0.0
    %1459 = vmatpush2.msra.mxu0 0.0
    %1460 = vmatprep.subr.mxu0 0.0
    %1461 = vmatpush2.msra.mxu0 0.0
    %1462 = vmatprep.subr.mxu0 0.0
    %1463 = vmatpush2.msra.mxu0 0.0
    %1464 = vmatprep.subr.mxu0 0.0
    %1465 = vmatpush2.msra.mxu0 0.0
    %1466 = vmatprep.subr.mxu0 0.0
    %1467 = vmatpush2.msra.mxu0 0.0
    %1468 = vmatprep.subr.mxu0 0.0
    %1469 = vmatpush2.msra.mxu0 0.0
    %1470 = vmatprep.subr.mxu0 0.0
    %1471 = vmatpush2.msra.mxu0 0.0
    %1472 = vmatprep.subr.mxu0 0.0
    %1473 = vmatpush2.msra.mxu0 0.0
    %1474 = vmatprep.subr.mxu0 0.0
    %1475 = vmatpush2.msra.mxu0 0.0
    %1476 = vmatprep.subr.mxu0 0.0
    %1477 = vmatpush2.msra.mxu0 0.0
    %1478 = vmatprep.subr.mxu0 0.0
    %1479 = vmatpush2.msra.mxu0 0.0
    %1480 = vmatprep.mubr.f32.mxu0 0.0
    %1481 = vmatmul.mubr.f32.gmra.mxu0 %v527
    %v1482 = vpop.f32.mrf.mxu0
    %v1483 = vadd.f32 0.0, %v1482
    %v1484 = vpop.f32.mrf.mxu0
    %1485 = vdwg.mxu0
    %s1486 = scalar_lea.vmem [#allocation14], 16
    %1487 = vst [vmem:[%s1486] sm:$0xff] %v1483
    // Predicated region
    $region50: #{tpu_custom_call.1} parent=1 // pred_check
      _
    $region51: #{tpu_custom_call.1} parent=1 // pred_check_branch
      %1489 = sbr.rel (0) target = $region53
    $region52: #{tpu_custom_call.1} parent=1 // pred_region
      %s1491 = ssub.s32 3072, 3072
      %1492 = vsyncadd [#allocation4], %s1491
      %s1493 = sshll.u32 [#allocation13], 4
      %s1494 = int_to_ptr.vmem [resolvable:$true] %s1493
      %1499 = dma.vmem_to_hbm [thread:$0]  %s1494, 3072, %s6, [#allocation4], 128, 128, 8
    $region53: #{tpu_custom_call.1} parent=1 // pred_fallthru
      _
    // Predicated region
    $region54: #{tpu_custom_call.1} parent=1 // pred_check
      _
    $region55: #{tpu_custom_call.1} parent=1 // pred_check_branch
      %1501 = sbr.rel (0) target = $region57
    $region56: #{tpu_custom_call.1} parent=1 // pred_region
      %s1503 = ssub.s32 384, 384
      %1504 = vsyncadd [#allocation15], %s1503
      %s1505 = sshll.u32 [#allocation14], 4
      %s1506 = int_to_ptr.vmem [resolvable:$true] %s1505
      %1511 = dma.vmem_to_hbm [thread:$0]  %s1506, 384, %s7, [#allocation15], 128, 128, 8
    $region57: #{tpu_custom_call.1} parent=1 // pred_fallthru
      _
    // Predicated region
    $region58: #{tpu_custom_call.1} parent=1 // pred_check
      _
    $region59: #{tpu_custom_call.1} parent=1 // pred_check_branch
      %1513 = sbr.rel (0) target = $region61
    $region60: #{tpu_custom_call.1} parent=1 // pred_region
      %1514 = dma.done [#allocation4], 3072
    $region61: #{tpu_custom_call.1} parent=1 // pred_fallthru
      _
    // Predicated region
    $region62: #{tpu_custom_call.1} parent=1 // pred_check
      _
    $region63: #{tpu_custom_call.1} parent=1 // pred_check_branch
      %1516 = sbr.rel (0) target = $region65
    $region64: #{tpu_custom_call.1} parent=1 // pred_region
      %1517 = dma.done [#allocation15], 384
    $region65: #{tpu_custom_call.1} parent=1 // pred_fallthru
      _
    %1518 = vsyncpa [#allocation3], 1
    %1519 = vsyncpa [#allocation6], 1
    %1520 = vsyncpa [#allocation9], 1
    %1521 = vsyncpa [#allocation12], 1
    %1522 = vsyncpa [#allocation4], 1
    %1523 = vsyncpa [#allocation15], 1

</llo_original>
